<compile_context>
chip_gen: v6e
topology: v6e:2x2x1
jax: 0.10.0
libtpu: 0.0.40
codegen_flags: <defaults>
</compile_context>

<pallas_src>
import jax
import jax.numpy as jnp
from jax.experimental import pallas as pl
from jax.experimental.pallas import tpu as pltpu

EPS = 1e-5
MATMUL_DTYPE = jnp.bfloat16      # MXU-native on v5e/v6e/v7x (f32 accumulation)
ACT_DTYPE = jnp.bfloat16         # inter-layer activation storage (HBM traffic)
DEFAULT_TM = 4096                # row tile for the large-M tiled path
FUSED_MAX_ROWS = 2048            # whole forward in a single kernel when M <= this


def _round_up(x, m):
    return (x + m - 1) // m * m


def _vmem_limit(tile_bytes):
    # Double-buffered tiles + in-kernel f32 temporaries + compiler scratch, capped well
    # below v7x's 64 MiB physical VMEM (v5e/v6e have 128 MiB, so the cap is always safe).
    return int(min(max(4 * tile_bytes + (16 << 20), 32 << 20), 48 << 20))


# --------------------------------------------------------------------------------------
# Kernel A (tiled path): [folded BN affine of the previous layer (+ReLU)] -> bf16 matmul
# -> write bf16 h tile (+ optional f32 pre-activation output) -> accumulate per-feature
# one-pass BN statistics (sum / sum-of-squares, f32, per view).
# Grid: (view, row-tile).  Stats accumulators are revisited across row tiles.
# --------------------------------------------------------------------------------------
def _make_linear_stats_kernel(pre_affine, pre_relu, emit_pre, tm, rows_tail):
    def compute(x_ref, scale_ref, shift_ref, w_ref, h_ref, pre_ref, sum_ref, sumsq_ref):
        i = pl.program_id(1)

        @pl.when(i == 0)
        def _():
            sum_ref[...] = jnp.zeros_like(sum_ref)
            sumsq_ref[...] = jnp.zeros_like(sumsq_ref)

        a = x_ref[...]
        if pre_affine:
            # Previous layer's training-mode BN folded into one scale/shift FMA, applied
            # lazily here so normalize(+ReLU)+matmul stay fused.  Elementwise math in f32.
            a = a.astype(jnp.float32) * scale_ref[...] + shift_ref[...]
            if pre_relu:
                a = jnp.maximum(a, 0.0)
            if emit_pre:
                pre_ref[...] = a.astype(pre_ref.dtype)   # exported projector output z
            a = a.astype(MATMUL_DTYPE)

        # bf16 inputs, f32 accumulation on the MXU.
        h = jnp.dot(a, w_ref[...], preferred_element_type=jnp.float32)
        h_ref[...] = h.astype(h_ref.dtype)

        def accumulate(hv):
            sum_ref[...] += jnp.sum(hv, axis=0, keepdims=True)
            sumsq_ref[...] += jnp.sum(hv * hv, axis=0, keepdims=True)

        if rows_tail is None:
            accumulate(h)
        else:
            # Row masking is only needed on the final (partial) row tile.
            last = i == pl.num_programs(1) - 1

            @pl.when(jnp.logical_not(last))
            def _():
                accumulate(h)

            @pl.when(last)
            def _():
                row = jax.lax.broadcasted_iota(jnp.int32, (tm, 1), 0)
                accumulate(jnp.where(row < rows_tail, h, 0.0))

    if pre_affine and emit_pre:
        def kernel(x, scale, shift, w, h, pre, s, ss):
            compute(x, scale, shift, w, h, pre, s, ss)
    elif pre_affine:
        def kernel(x, scale, shift, w, h, s, ss):
            compute(x, scale, shift, w, h, None, s, ss)
    else:
        def kernel(x, w, h, s, ss):
            compute(x, None, None, w, h, None, s, ss)
    return kernel


def _linear_stats(x, w, gamma, beta, *, tm, scale=None, shift=None,
                  pre_relu=False, emit_pre=False):
    """h = [BN-affine(+ReLU)](x) @ w for each of the V stacked views.

    x: (V, m, din); w: (din, dout).  The Linear bias is dropped: it cancels exactly in
    this layer's training-mode BatchNorm mean subtraction (reference applies it).
    Returns (h_bf16, bn_scale, bn_shift, pre) where bn_scale/bn_shift fold THIS layer's
    BN and `pre` (only when emit_pre=True) is the affine result applied to the input.
    """
    assert (not emit_pre) or (scale is not None)
    V, m, din = x.shape
    dout = w.shape[1]
    nt = pl.cdiv(m, tm)
    rows_tail = None if m % tm == 0 else m - (nt - 1) * tm
    pre_affine = scale is not None

    kernel = _make_linear_stats_kernel(pre_affine, pre_relu, emit_pre, tm, rows_tail)

    x_spec = pl.BlockSpec((None, tm, din), lambda v, i: (v, i, 0))
    vec_in = pl.BlockSpec((None, 1, din), lambda v, i: (v, 0, 0))
    w_spec = pl.BlockSpec((din, dout), lambda v, i: (0, 0))          # resident weight
    h_spec = pl.BlockSpec((None, tm, dout), lambda v, i: (v, i, 0))
    pre_spec = pl.BlockSpec((None, tm, din), lambda v, i: (v, i, 0))
    acc_spec = pl.BlockSpec((None, 1, dout), lambda v, i: (v, 0, 0))  # per-view accumulator

    w_bf16 = w.astype(MATMUL_DTYPE)
    if pre_affine:
        in_specs = [x_spec, vec_in, vec_in, w_spec]
        args = (x, scale, shift, w_bf16)
    else:
        in_specs = [x_spec, w_spec]
        args = (x, w_bf16)

    out_specs = [h_spec]
    out_shapes = [jax.ShapeDtypeStruct((V, m, dout), ACT_DTYPE)]
    if emit_pre:
        out_specs.append(pre_spec)
        out_shapes.append(jax.ShapeDtypeStruct((V, m, din), jnp.float32))
    out_specs += [acc_spec, acc_spec]
    out_shapes += [jax.ShapeDtypeStruct((V, 1, dout), jnp.float32)] * 2

    tile_bytes = (tm * din * x.dtype.itemsize          # input tile
                  + tm * dout * 2                      # bf16 h tile
                  + (tm * din * 4 if emit_pre else 0)  # f32 pre tile
                  + din * dout * 2)                    # bf16 weight

    outs = pl.pallas_call(
        kernel,
        grid=(V, nt),
        in_specs=in_specs,
        out_specs=tuple(out_specs),
        out_shape=tuple(out_shapes),
        compiler_params=pltpu.CompilerParams(
            # View axis independent -> megacore-shardable (v7x: one view per TensorCore);
            # row axis revisits the resident stats accumulators -> arbitrary.
            dimension_semantics=("parallel", "arbitrary"),
            vmem_limit_bytes=_vmem_limit(tile_bytes)),
    )(*args)

    if emit_pre:
        h, pre, s, ss = outs
    else:
        h, s, ss = outs
        pre = None

    # Fold the training-mode BN (biased variance, eps=1e-5) into one per-view scale/shift.
    # TODO(synk): one-pass E[h^2]-E[h]^2 in f32 can lose precision when |mean| >> std at
    # very large M; acceptable here because the inputs are BN-normalized activations.
    inv_m = 1.0 / float(m)
    mean = s * inv_m
    var = jnp.maximum(ss * inv_m - mean * mean, 0.0)
    bn_scale = gamma * jax.lax.rsqrt(var + EPS)              # (V, 1, dout)
    bn_shift = beta - mean * bn_scale
    return h, bn_scale, bn_shift, pre


# --------------------------------------------------------------------------------------
# Kernel C (tiled path): folded BN affine + ReLU + final Linear (with bias, no BN after).
# Fully parallel grid (no resident outputs).
# --------------------------------------------------------------------------------------
def _affine_relu_linear_kernel(x_ref, scale_ref, shift_ref, w_ref, b_ref, o_ref):
    a = x_ref[...].astype(jnp.float32) * scale_ref[...] + shift_ref[...]
    a = jnp.maximum(a, 0.0).astype(MATMUL_DTYPE)
    o_ref[...] = (jnp.dot(a, w_ref[...], preferred_element_type=jnp.float32)
                  + b_ref[...]).astype(o_ref.dtype)


def _affine_relu_linear(x, scale, shift, w, b, *, tm):
    V, m, din = x.shape
    dout = w.shape[1]
    nt = pl.cdiv(m, tm)
    tile_bytes = tm * din * x.dtype.itemsize + tm * dout * 4 + din * dout * 2
    return pl.pallas_call(
        _affine_relu_linear_kernel,
        grid=(V, nt),
        in_specs=[pl.BlockSpec((None, tm, din), lambda v, i: (v, i, 0)),
                  pl.BlockSpec((None, 1, din), lambda v, i: (v, 0, 0)),
                  pl.BlockSpec((None, 1, din), lambda v, i: (v, 0, 0)),
                  pl.BlockSpec((din, dout), lambda v, i: (0, 0)),
                  pl.BlockSpec((1, dout), lambda v, i: (0, 0))],
        out_specs=pl.BlockSpec((None, tm, dout), lambda v, i: (v, i, 0)),
        out_shape=jax.ShapeDtypeStruct((V, m, dout), jnp.float32),
        compiler_params=pltpu.CompilerParams(
            dimension_semantics=("parallel", "parallel"),
            vmem_limit_bytes=_vmem_limit(tile_bytes)),
    )(x, scale, shift, w.astype(MATMUL_DTYPE), b)


# --------------------------------------------------------------------------------------
# Small-M fast path: the whole projector + predictor for one view per grid step, all
# weights resident, activations never touch HBM, exact two-pass BN.
# --------------------------------------------------------------------------------------
def _fused_kernel(x_ref, w1, g1, be1, w2, g2, be2, w3, g3, be3,
                  pw1, pg1, pbe1, pw2, pb2, z_ref, p_ref):
    def bn(h, g, b):
        mu = jnp.mean(h, axis=0, keepdims=True)
        var = jnp.mean(jnp.square(h - mu), axis=0, keepdims=True)
        return (h - mu) * jax.lax.rsqrt(var + EPS) * g[...] + b[...]

    def mm(a, w):
        return jnp.dot(a.astype(MATMUL_DTYPE), w[...], preferred_element_type=jnp.float32)

    a = x_ref[...]
    h = jnp.maximum(bn(mm(a, w1), g1, be1), 0.0)
    h = jnp.maximum(bn(mm(h, w2), g2, be2), 0.0)
    z = bn(mm(h, w3), g3, be3)                    # projector output (final BN, no ReLU)
    z_ref[...] = z.astype(z_ref.dtype)
    h = jnp.maximum(bn(mm(z, pw1), pg1, pbe1), 0.0)
    p_ref[...] = (mm(h, pw2) + pb2[...]).astype(p_ref.dtype)


def _fused_forward(xs, proj, pred):
    V, m, din = xs.shape
    hid = proj["w1"].shape[1]
    zdim = proj["w3"].shape[1]
    pdim = pred["w2"].shape[1]

    def full(shape):
        return pl.BlockSpec(shape, lambda v, _s=shape: tuple(0 for _ in _s))

    def rows(d):
        return pl.BlockSpec((None, m, d), lambda v: (v, 0, 0))

    weights = (proj["w1"].astype(MATMUL_DTYPE), proj["g1"], proj["be1"],
               proj["w2"].astype(MATMUL_DTYPE), proj["g2"], proj["be2"],
               proj["w3"].astype(MATMUL_DTYPE), proj["g3"], proj["be3"],
               pred["w1"].astype(MATMUL_DTYPE), pred["g1"], pred["be1"],
               pred["w2"].astype(MATMUL_DTYPE), pred["b2"])
    w_specs = [full(w.shape) for w in weights]

    tile_bytes = m * (din * 2 + zdim * 4 + pdim * 4 + 6 * max(hid, zdim) * 4)
    z, p = pl.pallas_call(
        _fused_kernel,
        grid=(V,),
        in_specs=[rows(din)] + w_specs,
        out_specs=(rows(zdim), rows(pdim)),
        out_shape=(jax.ShapeDtypeStruct((V, m, zdim), jnp.float32),
                   jax.ShapeDtypeStruct((V, m, pdim), jnp.float32)),
        compiler_params=pltpu.CompilerParams(
            dimension_semantics=("parallel",),   # one view per TensorCore on v7x
            vmem_limit_bytes=_vmem_limit(tile_bytes)),
    )(xs, *weights)
    return z, p


# --------------------------------------------------------------------------------------
# Tiled pipeline (large M): 5 view-batched pallas_calls.
# --------------------------------------------------------------------------------------
def _tiled_forward(xs, proj, pred, *, tm):
    h1, sc1, sh1, _ = _linear_stats(xs, proj["w1"], proj["g1"], proj["be1"], tm=tm)
    h2, sc2, sh2, _ = _linear_stats(h1, proj["w2"], proj["g2"], proj["be2"], tm=tm,
                                    scale=sc1, shift=sh1, pre_relu=True)
    h3, sc3, sh3, _ = _linear_stats(h2, proj["w3"], proj["g3"], proj["be3"], tm=tm,
                                    scale=sc2, shift=sh2, pre_relu=True)
    # Predictor layer 1 with the projector's final BN affine fused in; emits z (f32).
    hp, scp, shp, z = _linear_stats(h3, pred["w1"], pred["g1"], pred["be1"], tm=tm,
                                    scale=sc3, shift=sh3, pre_relu=False, emit_pre=True)
    p = _affine_relu_linear(hp, scp, shp, pred["w2"], pred["b2"], tm=tm)
    return z, p


# --------------------------------------------------------------------------------------
# Module-level forward
# --------------------------------------------------------------------------------------
def simsiam_st_forward(feat1, feat2, params, *, tm=DEFAULT_TM, force_tiled=False):
    """SimSiam_ST.forward (training-mode BatchNorm, as in the PyTorch module).

    # TODO(synk): the backbone is an external module passed to SimSiam_ST's constructor and
    # is not defined in this file; feat1/feat2 stand in for backbone(x, aug=aug1/aug2) in the
    # usual (B, C, H, W) layout.
    """
    B, C, H, W = feat1.shape
    m = B * W * H
    # x.transpose(1, 3): (B, C, H, W) -> (B, W, H, C).  Stack both views, flatten the rows
    # and cast to bf16 in one XLA fusion so the first kernel already reads bf16 tiles.
    xs = (jnp.stack([feat1, feat2])
            .transpose(0, 1, 4, 3, 2)
            .reshape(2, m, C)
            .astype(ACT_DTYPE))
    proj, pred = params["proj"], params["pred"]
    if (not force_tiled) and m <= FUSED_MAX_ROWS:
        z, p = _fused_forward(xs, proj, pred)
    else:
        z, p = _tiled_forward(xs, proj, pred, tm=min(tm, _round_up(m, 8)))
    z = z.reshape(2, B, W, H, -1)
    p = p.reshape(2, B, W, H, -1)
    return p[0], p[1], jax.lax.stop_gradient(z[0]), jax.lax.stop_gradient(z[1])


# --------------------------------------------------------------------------------------
# Parameters + pure-JAX reference (straightforward semantics: biases applied, two-pass BN)
# --------------------------------------------------------------------------------------
def init_params(key, in_dim=256, hidden_dim=128, out_dim=256):
    ks = jax.random.split(key, 18)

    def linear(kw, kb, fi, fo):
        bound = 1.0 / jnp.sqrt(float(fi))
        w = jax.random.uniform(kw, (fi, fo), jnp.float32, -bound, bound)
        b = jax.random.uniform(kb, (1, fo), jnp.float32, -bound, bound)
        return w, b

    def bn(kg, kb, d):
        # Randomized BN affine so the folded scale/shift path is actually exercised.
        g = jax.random.uniform(kg, (1, d), jnp.float32, 0.5, 1.5)
        be = jax.random.uniform(kb, (1, d), jnp.float32, -0.2, 0.2)
        return g, be

    w1, b1 = linear(ks[0], ks[1], in_dim, hidden_dim);   g1, be1 = bn(ks[2], ks[3], hidden_dim)
    w2, b2 = linear(ks[4], ks[5], hidden_dim, hidden_dim); g2, be2 = bn(ks[6], ks[7], hidden_dim)
    w3, b3 = linear(ks[8], ks[9], hidden_dim, out_dim);   g3, be3 = bn(ks[10], ks[11], out_dim)
    proj = dict(w1=w1, b1=b1, g1=g1, be1=be1, w2=w2, b2=b2, g2=g2, be2=be2,
                w3=w3, b3=b3, g3=g3, be3=be3)

    pw1, pb1 = linear(ks[12], ks[13], out_dim, hidden_dim); pg1, pbe1 = bn(ks[14], ks[15], hidden_dim)
    pw2, pb2 = linear(ks[16], ks[17], hidden_dim, out_dim)
    pred = dict(w1=pw1, b1=pb1, g1=pg1, be1=pbe1, w2=pw2, b2=pb2)
    return dict(proj=proj, pred=pred)


def _ref_linear(a, w, b):
    return jnp.dot(a.astype(MATMUL_DTYPE), w.astype(MATMUL_DTYPE),
                   preferred_element_type=jnp.float32) + b


def _ref_bn(h, g, be):
    mu = jnp.mean(h, axis=0, keepdims=True)
    var = jnp.mean((h - mu) ** 2, axis=0, keepdims=True)     # biased var (PyTorch train BN)
    return (h - mu) * jax.lax.rsqrt(var + EPS) * g + be


def reference_projector(x, p):
    h = jnp.maximum(_ref_bn(_ref_linear(x, p["w1"], p["b1"]), p["g1"], p["be1"]), 0.0)
    h = jnp.maximum(_ref_bn(_ref_linear(h, p["w2"], p["b2"]), p["g2"], p["be2"]), 0.0)
    return _ref_bn(_ref_linear(h, p["w3"], p["b3"]), p["g3"], p["be3"])


def reference_predictor(z, p):
    h = jnp.maximum(_ref_bn(_ref_linear(z, p["w1"], p["b1"]), p["g1"], p["be1"]), 0.0)
    return _ref_linear(h, p["w2"], p["b2"])


def reference_simsiam(feat1, feat2, params):
    outs = []
    for feat in (feat1, feat2):
        B, C, H, W = feat.shape
        x = jnp.transpose(feat, (0, 3, 2, 1)).reshape(-1, C)
        z = reference_projector(x, params["proj"])
        p = reference_predictor(z, params["pred"])
        outs.append((z.reshape(B, W, H, -1), p.reshape(B, W, H, -1)))
    (z1, p1), (z2, p2) = outs
    return p1, p2, z1, z2


if __name__ == "__main__":
    # Projector in_dim = args.nhid * 8 (nhid=32 -> 256), hidden=128, out=256 (module defaults).
    in_dim, B, H, W = 256, 2, 6, 6               # backbone feature map (B, C, H, W); M = 72 rows
    key = jax.random.PRNGKey(0)
    k1, k2, kp = jax.random.split(key, 3)
    feat1 = jax.random.normal(k1, (B, in_dim, H, W), jnp.float32)   # backbone(x, aug=aug1)
    feat2 = jax.random.normal(k2, (B, in_dim, H, W), jnp.float32)   # backbone(x, aug=aug2)
    params = init_params(kp)

    # Path 1: fused small-M kernel (M = 72 <= FUSED_MAX_ROWS).
    fwd_fused = jax.jit(lambda a, b: simsiam_st_forward(a, b, params))
    # Path 2: tiled path forced with a small row tile (3 row tiles per view, partial tail of
    # 8 rows -> exercises view batching, resident stats accumulators and tail masking).
    fwd_tiled = jax.jit(lambda a, b: simsiam_st_forward(a, b, params, tm=32, force_tiled=True))

    ref = reference_simsiam(feat1, feat2, params)
    names = ("p1", "p2", "z1", "z2")
    # Tolerance reflects bf16 MXU inputs + bf16 inter-layer activation storage (perf review
    # tradeoffs); with MATMUL_DTYPE/ACT_DTYPE = float32 the paths agree to ~1e-5.
    atol = rtol = 4e-2
    for tag, fwd in (("fused", fwd_fused), ("tiled", fwd_tiled)):
        outs = jax.block_until_ready(fwd(feat1, feat2))
        for got, want, name in zip(outs, ref, names):
            assert got.shape == want.shape, f"[{tag}] shape mismatch in {name}"
            err = float(jnp.max(jnp.abs(got - want)))
            assert jnp.allclose(got, want, atol=atol, rtol=rtol), \
                f"[{tag}] value mismatch in {name}: max |err| = {err}"
    print("KERNEL_OK")
</pallas_src>

<mosaic_0001>
module attributes {stable_mosaic.version = 11 : i64} {
  func.func @_fused_kernel(%arg0: i32, %arg1: memref<1x72x256xbf16, #tpu.memory_space<vmem>>, %arg2: memref<256x128xbf16, #tpu.memory_space<vmem>>, %arg3: memref<1x128xf32, #tpu.memory_space<vmem>>, %arg4: memref<1x128xf32, #tpu.memory_space<vmem>>, %arg5: memref<128x128xbf16, #tpu.memory_space<vmem>>, %arg6: memref<1x128xf32, #tpu.memory_space<vmem>>, %arg7: memref<1x128xf32, #tpu.memory_space<vmem>>, %arg8: memref<128x256xbf16, #tpu.memory_space<vmem>>, %arg9: memref<1x256xf32, #tpu.memory_space<vmem>>, %arg10: memref<1x256xf32, #tpu.memory_space<vmem>>, %arg11: memref<256x128xbf16, #tpu.memory_space<vmem>>, %arg12: memref<1x128xf32, #tpu.memory_space<vmem>>, %arg13: memref<1x128xf32, #tpu.memory_space<vmem>>, %arg14: memref<128x256xbf16, #tpu.memory_space<vmem>>, %arg15: memref<1x256xf32, #tpu.memory_space<vmem>>, %arg16: memref<1x72x256xf32, #tpu.memory_space<vmem>>, %arg17: memref<1x72x256xf32, #tpu.memory_space<vmem>>) attributes {dimension_semantics = [#tpu.dimension_semantics<parallel>], iteration_bounds = array<i64: 2>, scalar_prefetch = 0 : i64, scratch_operands = 0 : i64, tpu.core_type = #tpu.core_type<tc>, window_params = [{transform_indices = @transform_0, window_bounds = array<i64: 1, 72, 256>}, {pipeline_mode = #tpu.pipeline_mode<synchronous>, transform_indices = @transform_1, window_bounds = array<i64: 256, 128>}, {pipeline_mode = #tpu.pipeline_mode<synchronous>, transform_indices = @transform_2, window_bounds = array<i64: 1, 128>}, {pipeline_mode = #tpu.pipeline_mode<synchronous>, transform_indices = @transform_3, window_bounds = array<i64: 1, 128>}, {pipeline_mode = #tpu.pipeline_mode<synchronous>, transform_indices = @transform_4, window_bounds = array<i64: 128, 128>}, {pipeline_mode = #tpu.pipeline_mode<synchronous>, transform_indices = @transform_5, window_bounds = array<i64: 1, 128>}, {pipeline_mode = #tpu.pipeline_mode<synchronous>, transform_indices = @transform_6, window_bounds = array<i64: 1, 128>}, {pipeline_mode = #tpu.pipeline_mode<synchronous>, transform_indices = @transform_7, window_bounds = array<i64: 128, 256>}, {pipeline_mode = #tpu.pipeline_mode<synchronous>, transform_indices = @transform_8, window_bounds = array<i64: 1, 256>}, {pipeline_mode = #tpu.pipeline_mode<synchronous>, transform_indices = @transform_9, window_bounds = array<i64: 1, 256>}, {pipeline_mode = #tpu.pipeline_mode<synchronous>, transform_indices = @transform_10, window_bounds = array<i64: 256, 128>}, {pipeline_mode = #tpu.pipeline_mode<synchronous>, transform_indices = @transform_11, window_bounds = array<i64: 1, 128>}, {pipeline_mode = #tpu.pipeline_mode<synchronous>, transform_indices = @transform_12, window_bounds = array<i64: 1, 128>}, {pipeline_mode = #tpu.pipeline_mode<synchronous>, transform_indices = @transform_13, window_bounds = array<i64: 128, 256>}, {pipeline_mode = #tpu.pipeline_mode<synchronous>, transform_indices = @transform_14, window_bounds = array<i64: 1, 256>}, {transform_indices = @transform_15, window_bounds = array<i64: 1, 72, 256>}, {transform_indices = @transform_16, window_bounds = array<i64: 1, 72, 256>}]} {
    %c0 = arith.constant 0 : index
    %c0_0 = arith.constant 0 : index
    %c0_1 = arith.constant 0 : index
    %0 = vector.load %arg1[%c0, %c0_0, %c0_1] : memref<1x72x256xbf16, #tpu.memory_space<vmem>>, vector<1x72x256xbf16>
    %1 = vector.shape_cast %0 : vector<1x72x256xbf16> to vector<72x256xbf16>
    %c0_2 = arith.constant 0 : index
    %c0_3 = arith.constant 0 : index
    %2 = vector.load %arg2[%c0_2, %c0_3] : memref<256x128xbf16, #tpu.memory_space<vmem>>, vector<256x128xbf16>
    %cst = arith.constant dense<0.000000e+00> : vector<72x128xf32>
    %3 = tpu.matmul %1, %2, %cst {dimension_numbers = #tpu.dot_dimension_numbers<[1], [0], [0], [1], [0, 0, 1, 1], [], []>} : vector<72x256xbf16>, vector<256x128xbf16>, vector<72x128xf32> -> vector<72x128xf32>
    %cst_4 = arith.constant dense<0.000000e+00> : vector<128xf32>
    %4 = vector.multi_reduction <add>, %3, %cst_4 [0] : vector<72x128xf32> to vector<128xf32>
    %5 = vector.shape_cast %4 : vector<128xf32> to vector<1x128xf32>
    %cst_5 = arith.constant 7.200000e+01 : f32
    %6 = vector.broadcast %cst_5 : f32 to vector<1x128xf32>
    %7 = arith.divf %5, %6 : vector<1x128xf32>
    %8 = vector.broadcast %7 : vector<1x128xf32> to vector<72x128xf32>
    %9 = arith.subf %3, %8 : vector<72x128xf32>
    %10 = arith.mulf %9, %9 : vector<72x128xf32>
    %cst_6 = arith.constant dense<0.000000e+00> : vector<128xf32>
    %11 = vector.multi_reduction <add>, %10, %cst_6 [0] : vector<72x128xf32> to vector<128xf32>
    %12 = vector.shape_cast %11 : vector<128xf32> to vector<1x128xf32>
    %cst_7 = arith.constant 7.200000e+01 : f32
    %13 = vector.broadcast %cst_7 : f32 to vector<1x128xf32>
    %14 = arith.divf %12, %13 : vector<1x128xf32>
    %15 = vector.broadcast %7 : vector<1x128xf32> to vector<72x128xf32>
    %16 = arith.subf %3, %15 : vector<72x128xf32>
    %cst_8 = arith.constant 9.99999974E-6 : f32
    %17 = vector.broadcast %cst_8 : f32 to vector<1x128xf32>
    %18 = arith.addf %14, %17 : vector<1x128xf32>
    %19 = math.rsqrt %18 : vector<1x128xf32>
    %20 = vector.broadcast %19 : vector<1x128xf32> to vector<72x128xf32>
    %21 = arith.mulf %16, %20 : vector<72x128xf32>
    %c0_9 = arith.constant 0 : index
    %c0_10 = arith.constant 0 : index
    %22 = vector.load %arg3[%c0_9, %c0_10] : memref<1x128xf32, #tpu.memory_space<vmem>>, vector<1x128xf32>
    %23 = vector.broadcast %22 : vector<1x128xf32> to vector<72x128xf32>
    %24 = arith.mulf %21, %23 : vector<72x128xf32>
    %c0_11 = arith.constant 0 : index
    %c0_12 = arith.constant 0 : index
    %25 = vector.load %arg4[%c0_11, %c0_12] : memref<1x128xf32, #tpu.memory_space<vmem>>, vector<1x128xf32>
    %26 = vector.broadcast %25 : vector<1x128xf32> to vector<72x128xf32>
    %27 = arith.addf %24, %26 : vector<72x128xf32>
    %cst_13 = arith.constant 0.000000e+00 : f32
    %28 = vector.broadcast %cst_13 : f32 to vector<72x128xf32>
    %29 = arith.maximumf %27, %28 : vector<72x128xf32>
    %30 = arith.truncf %29 : vector<72x128xf32> to vector<72x128xbf16>
    %c0_14 = arith.constant 0 : index
    %c0_15 = arith.constant 0 : index
    %31 = vector.load %arg5[%c0_14, %c0_15] : memref<128x128xbf16, #tpu.memory_space<vmem>>, vector<128x128xbf16>
    %cst_16 = arith.constant dense<0.000000e+00> : vector<72x128xf32>
    %32 = tpu.matmul %30, %31, %cst_16 {dimension_numbers = #tpu.dot_dimension_numbers<[1], [0], [0], [1], [0, 0, 1, 1], [], []>} : vector<72x128xbf16>, vector<128x128xbf16>, vector<72x128xf32> -> vector<72x128xf32>
    %cst_17 = arith.constant dense<0.000000e+00> : vector<128xf32>
    %33 = vector.multi_reduction <add>, %32, %cst_17 [0] : vector<72x128xf32> to vector<128xf32>
    %34 = vector.shape_cast %33 : vector<128xf32> to vector<1x128xf32>
    %cst_18 = arith.constant 7.200000e+01 : f32
    %35 = vector.broadcast %cst_18 : f32 to vector<1x128xf32>
    %36 = arith.divf %34, %35 : vector<1x128xf32>
    %37 = vector.broadcast %36 : vector<1x128xf32> to vector<72x128xf32>
    %38 = arith.subf %32, %37 : vector<72x128xf32>
    %39 = arith.mulf %38, %38 : vector<72x128xf32>
    %cst_19 = arith.constant dense<0.000000e+00> : vector<128xf32>
    %40 = vector.multi_reduction <add>, %39, %cst_19 [0] : vector<72x128xf32> to vector<128xf32>
    %41 = vector.shape_cast %40 : vector<128xf32> to vector<1x128xf32>
    %cst_20 = arith.constant 7.200000e+01 : f32
    %42 = vector.broadcast %cst_20 : f32 to vector<1x128xf32>
    %43 = arith.divf %41, %42 : vector<1x128xf32>
    %44 = vector.broadcast %36 : vector<1x128xf32> to vector<72x128xf32>
    %45 = arith.subf %32, %44 : vector<72x128xf32>
    %cst_21 = arith.constant 9.99999974E-6 : f32
    %46 = vector.broadcast %cst_21 : f32 to vector<1x128xf32>
    %47 = arith.addf %43, %46 : vector<1x128xf32>
    %48 = math.rsqrt %47 : vector<1x128xf32>
    %49 = vector.broadcast %48 : vector<1x128xf32> to vector<72x128xf32>
    %50 = arith.mulf %45, %49 : vector<72x128xf32>
    %c0_22 = arith.constant 0 : index
    %c0_23 = arith.constant 0 : index
    %51 = vector.load %arg6[%c0_22, %c0_23] : memref<1x128xf32, #tpu.memory_space<vmem>>, vector<1x128xf32>
    %52 = vector.broadcast %51 : vector<1x128xf32> to vector<72x128xf32>
    %53 = arith.mulf %50, %52 : vector<72x128xf32>
    %c0_24 = arith.constant 0 : index
    %c0_25 = arith.constant 0 : index
    %54 = vector.load %arg7[%c0_24, %c0_25] : memref<1x128xf32, #tpu.memory_space<vmem>>, vector<1x128xf32>
    %55 = vector.broadcast %54 : vector<1x128xf32> to vector<72x128xf32>
    %56 = arith.addf %53, %55 : vector<72x128xf32>
    %cst_26 = arith.constant 0.000000e+00 : f32
    %57 = vector.broadcast %cst_26 : f32 to vector<72x128xf32>
    %58 = arith.maximumf %56, %57 : vector<72x128xf32>
    %59 = arith.truncf %58 : vector<72x128xf32> to vector<72x128xbf16>
    %c0_27 = arith.constant 0 : index
    %c0_28 = arith.constant 0 : index
    %60 = vector.load %arg8[%c0_27, %c0_28] : memref<128x256xbf16, #tpu.memory_space<vmem>>, vector<128x256xbf16>
    %cst_29 = arith.constant dense<0.000000e+00> : vector<72x256xf32>
    %61 = tpu.matmul %59, %60, %cst_29 {dimension_numbers = #tpu.dot_dimension_numbers<[1], [0], [0], [1], [0, 0, 1, 1], [], []>} : vector<72x128xbf16>, vector<128x256xbf16>, vector<72x256xf32> -> vector<72x256xf32>
    %cst_30 = arith.constant dense<0.000000e+00> : vector<256xf32>
    %62 = vector.multi_reduction <add>, %61, %cst_30 [0] : vector<72x256xf32> to vector<256xf32>
    %63 = vector.shape_cast %62 : vector<256xf32> to vector<1x256xf32>
    %cst_31 = arith.constant 7.200000e+01 : f32
    %64 = vector.broadcast %cst_31 : f32 to vector<1x256xf32>
    %65 = arith.divf %63, %64 : vector<1x256xf32>
    %66 = vector.broadcast %65 : vector<1x256xf32> to vector<72x256xf32>
    %67 = arith.subf %61, %66 : vector<72x256xf32>
    %68 = arith.mulf %67, %67 : vector<72x256xf32>
    %cst_32 = arith.constant dense<0.000000e+00> : vector<256xf32>
    %69 = vector.multi_reduction <add>, %68, %cst_32 [0] : vector<72x256xf32> to vector<256xf32>
    %70 = vector.shape_cast %69 : vector<256xf32> to vector<1x256xf32>
    %cst_33 = arith.constant 7.200000e+01 : f32
    %71 = vector.broadcast %cst_33 : f32 to vector<1x256xf32>
    %72 = arith.divf %70, %71 : vector<1x256xf32>
    %73 = vector.broadcast %65 : vector<1x256xf32> to vector<72x256xf32>
    %74 = arith.subf %61, %73 : vector<72x256xf32>
    %cst_34 = arith.constant 9.99999974E-6 : f32
    %75 = vector.broadcast %cst_34 : f32 to vector<1x256xf32>
    %76 = arith.addf %72, %75 : vector<1x256xf32>
    %77 = math.rsqrt %76 : vector<1x256xf32>
    %78 = vector.broadcast %77 : vector<1x256xf32> to vector<72x256xf32>
    %79 = arith.mulf %74, %78 : vector<72x256xf32>
    %c0_35 = arith.constant 0 : index
    %c0_36 = arith.constant 0 : index
    %80 = vector.load %arg9[%c0_35, %c0_36] : memref<1x256xf32, #tpu.memory_space<vmem>>, vector<1x256xf32>
    %81 = vector.broadcast %80 : vector<1x256xf32> to vector<72x256xf32>
    %82 = arith.mulf %79, %81 : vector<72x256xf32>
    %c0_37 = arith.constant 0 : index
    %c0_38 = arith.constant 0 : index
    %83 = vector.load %arg10[%c0_37, %c0_38] : memref<1x256xf32, #tpu.memory_space<vmem>>, vector<1x256xf32>
    %84 = vector.broadcast %83 : vector<1x256xf32> to vector<72x256xf32>
    %85 = arith.addf %82, %84 : vector<72x256xf32>
    %c0_39 = arith.constant 0 : index
    %c0_40 = arith.constant 0 : index
    %c0_41 = arith.constant 0 : index
    %86 = vector.load %arg16[%c0_39, %c0_40, %c0_41] : memref<1x72x256xf32, #tpu.memory_space<vmem>>, vector<1x72x256xf32>
    %87 = vector.shape_cast %86 : vector<1x72x256xf32> to vector<72x256xf32>
    %88 = vector.shape_cast %85 : vector<72x256xf32> to vector<1x72x256xf32>
    tpu.vector_store %arg16[%c0_39, %c0_40, %c0_41], %88 {strides = array<i32>} : memref<1x72x256xf32, #tpu.memory_space<vmem>>, vector<1x72x256xf32>,
    %89 = arith.truncf %85 : vector<72x256xf32> to vector<72x256xbf16>
    %c0_42 = arith.constant 0 : index
    %c0_43 = arith.constant 0 : index
    %90 = vector.load %arg11[%c0_42, %c0_43] : memref<256x128xbf16, #tpu.memory_space<vmem>>, vector<256x128xbf16>
    %cst_44 = arith.constant dense<0.000000e+00> : vector<72x128xf32>
    %91 = tpu.matmul %89, %90, %cst_44 {dimension_numbers = #tpu.dot_dimension_numbers<[1], [0], [0], [1], [0, 0, 1, 1], [], []>} : vector<72x256xbf16>, vector<256x128xbf16>, vector<72x128xf32> -> vector<72x128xf32>
    %cst_45 = arith.constant dense<0.000000e+00> : vector<128xf32>
    %92 = vector.multi_reduction <add>, %91, %cst_45 [0] : vector<72x128xf32> to vector<128xf32>
    %93 = vector.shape_cast %92 : vector<128xf32> to vector<1x128xf32>
    %cst_46 = arith.constant 7.200000e+01 : f32
    %94 = vector.broadcast %cst_46 : f32 to vector<1x128xf32>
    %95 = arith.divf %93, %94 : vector<1x128xf32>
    %96 = vector.broadcast %95 : vector<1x128xf32> to vector<72x128xf32>
    %97 = arith.subf %91, %96 : vector<72x128xf32>
    %98 = arith.mulf %97, %97 : vector<72x128xf32>
    %cst_47 = arith.constant dense<0.000000e+00> : vector<128xf32>
    %99 = vector.multi_reduction <add>, %98, %cst_47 [0] : vector<72x128xf32> to vector<128xf32>
    %100 = vector.shape_cast %99 : vector<128xf32> to vector<1x128xf32>
    %cst_48 = arith.constant 7.200000e+01 : f32
    %101 = vector.broadcast %cst_48 : f32 to vector<1x128xf32>
    %102 = arith.divf %100, %101 : vector<1x128xf32>
    %103 = vector.broadcast %95 : vector<1x128xf32> to vector<72x128xf32>
    %104 = arith.subf %91, %103 : vector<72x128xf32>
    %cst_49 = arith.constant 9.99999974E-6 : f32
    %105 = vector.broadcast %cst_49 : f32 to vector<1x128xf32>
    %106 = arith.addf %102, %105 : vector<1x128xf32>
    %107 = math.rsqrt %106 : vector<1x128xf32>
    %108 = vector.broadcast %107 : vector<1x128xf32> to vector<72x128xf32>
    %109 = arith.mulf %104, %108 : vector<72x128xf32>
    %c0_50 = arith.constant 0 : index
    %c0_51 = arith.constant 0 : index
    %110 = vector.load %arg12[%c0_50, %c0_51] : memref<1x128xf32, #tpu.memory_space<vmem>>, vector<1x128xf32>
    %111 = vector.broadcast %110 : vector<1x128xf32> to vector<72x128xf32>
    %112 = arith.mulf %109, %111 : vector<72x128xf32>
    %c0_52 = arith.constant 0 : index
    %c0_53 = arith.constant 0 : index
    %113 = vector.load %arg13[%c0_52, %c0_53] : memref<1x128xf32, #tpu.memory_space<vmem>>, vector<1x128xf32>
    %114 = vector.broadcast %113 : vector<1x128xf32> to vector<72x128xf32>
    %115 = arith.addf %112, %114 : vector<72x128xf32>
    %cst_54 = arith.constant 0.000000e+00 : f32
    %116 = vector.broadcast %cst_54 : f32 to vector<72x128xf32>
    %117 = arith.maximumf %115, %116 : vector<72x128xf32>
    %118 = arith.truncf %117 : vector<72x128xf32> to vector<72x128xbf16>
    %c0_55 = arith.constant 0 : index
    %c0_56 = arith.constant 0 : index
    %119 = vector.load %arg14[%c0_55, %c0_56] : memref<128x256xbf16, #tpu.memory_space<vmem>>, vector<128x256xbf16>
    %cst_57 = arith.constant dense<0.000000e+00> : vector<72x256xf32>
    %120 = tpu.matmul %118, %119, %cst_57 {dimension_numbers = #tpu.dot_dimension_numbers<[1], [0], [0], [1], [0, 0, 1, 1], [], []>} : vector<72x128xbf16>, vector<128x256xbf16>, vector<72x256xf32> -> vector<72x256xf32>
    %c0_58 = arith.constant 0 : index
    %c0_59 = arith.constant 0 : index
    %121 = vector.load %arg15[%c0_58, %c0_59] : memref<1x256xf32, #tpu.memory_space<vmem>>, vector<1x256xf32>
    %122 = vector.broadcast %121 : vector<1x256xf32> to vector<72x256xf32>
    %123 = arith.addf %120, %122 : vector<72x256xf32>
    %c0_60 = arith.constant 0 : index
    %c0_61 = arith.constant 0 : index
    %c0_62 = arith.constant 0 : index
    %124 = vector.load %arg17[%c0_60, %c0_61, %c0_62] : memref<1x72x256xf32, #tpu.memory_space<vmem>>, vector<1x72x256xf32>
    %125 = vector.shape_cast %124 : vector<1x72x256xf32> to vector<72x256xf32>
    %126 = vector.shape_cast %123 : vector<72x256xf32> to vector<1x72x256xf32>
    tpu.vector_store %arg17[%c0_60, %c0_61, %c0_62], %126 {strides = array<i32>} : memref<1x72x256xf32, #tpu.memory_space<vmem>>, vector<1x72x256xf32>,
    return
  }
  func.func @transform_0(%arg0: i32) -> (i32, i32, i32) {
    %c0_i32 = arith.constant 0 : i32
    %c0_i32_0 = arith.constant 0 : i32
    %c0_i32_1 = arith.constant 0 : i32
    return %arg0, %c0_i32, %c0_i32_0 : i32, i32, i32
  }
  func.func @transform_1(%arg0: i32) -> (i32, i32) {
    %c0_i32 = arith.constant 0 : i32
    %c0_i32_0 = arith.constant 0 : i32
    %c0_i32_1 = arith.constant 0 : i32
    return %c0_i32, %c0_i32_0 : i32, i32
  }
  func.func @transform_2(%arg0: i32) -> (i32, i32) {
    %c0_i32 = arith.constant 0 : i32
    %c0_i32_0 = arith.constant 0 : i32
    %c0_i32_1 = arith.constant 0 : i32
    return %c0_i32, %c0_i32_0 : i32, i32
  }
  func.func @transform_3(%arg0: i32) -> (i32, i32) {
    %c0_i32 = arith.constant 0 : i32
    %c0_i32_0 = arith.constant 0 : i32
    %c0_i32_1 = arith.constant 0 : i32
    return %c0_i32, %c0_i32_0 : i32, i32
  }
  func.func @transform_4(%arg0: i32) -> (i32, i32) {
    %c0_i32 = arith.constant 0 : i32
    %c0_i32_0 = arith.constant 0 : i32
    %c0_i32_1 = arith.constant 0 : i32
    return %c0_i32, %c0_i32_0 : i32, i32
  }
  func.func @transform_5(%arg0: i32) -> (i32, i32) {
    %c0_i32 = arith.constant 0 : i32
    %c0_i32_0 = arith.constant 0 : i32
    %c0_i32_1 = arith.constant 0 : i32
    return %c0_i32, %c0_i32_0 : i32, i32
  }
  func.func @transform_6(%arg0: i32) -> (i32, i32) {
    %c0_i32 = arith.constant 0 : i32
    %c0_i32_0 = arith.constant 0 : i32
    %c0_i32_1 = arith.constant 0 : i32
    return %c0_i32, %c0_i32_0 : i32, i32
  }
  func.func @transform_7(%arg0: i32) -> (i32, i32) {
    %c0_i32 = arith.constant 0 : i32
    %c0_i32_0 = arith.constant 0 : i32
    %c0_i32_1 = arith.constant 0 : i32
    return %c0_i32, %c0_i32_0 : i32, i32
  }
  func.func @transform_8(%arg0: i32) -> (i32, i32) {
    %c0_i32 = arith.constant 0 : i32
    %c0_i32_0 = arith.constant 0 : i32
    %c0_i32_1 = arith.constant 0 : i32
    return %c0_i32, %c0_i32_0 : i32, i32
  }
  func.func @transform_9(%arg0: i32) -> (i32, i32) {
    %c0_i32 = arith.constant 0 : i32
    %c0_i32_0 = arith.constant 0 : i32
    %c0_i32_1 = arith.constant 0 : i32
    return %c0_i32, %c0_i32_0 : i32, i32
  }
  func.func @transform_10(%arg0: i32) -> (i32, i32) {
    %c0_i32 = arith.constant 0 : i32
    %c0_i32_0 = arith.constant 0 : i32
    %c0_i32_1 = arith.constant 0 : i32
    return %c0_i32, %c0_i32_0 : i32, i32
  }
  func.func @transform_11(%arg0: i32) -> (i32, i32) {
    %c0_i32 = arith.constant 0 : i32
    %c0_i32_0 = arith.constant 0 : i32
    %c0_i32_1 = arith.constant 0 : i32
    return %c0_i32, %c0_i32_0 : i32, i32
  }
  func.func @transform_12(%arg0: i32) -> (i32, i32) {
    %c0_i32 = arith.constant 0 : i32
    %c0_i32_0 = arith.constant 0 : i32
    %c0_i32_1 = arith.constant 0 : i32
    return %c0_i32, %c0_i32_0 : i32, i32
  }
  func.func @transform_13(%arg0: i32) -> (i32, i32) {
    %c0_i32 = arith.constant 0 : i32
    %c0_i32_0 = arith.constant 0 : i32
    %c0_i32_1 = arith.constant 0 : i32
    return %c0_i32, %c0_i32_0 : i32, i32
  }
  func.func @transform_14(%arg0: i32) -> (i32, i32) {
    %c0_i32 = arith.constant 0 : i32
    %c0_i32_0 = arith.constant 0 : i32
    %c0_i32_1 = arith.constant 0 : i32
    return %c0_i32, %c0_i32_0 : i32, i32
  }
  func.func @transform_15(%arg0: i32) -> (i32, i32, i32) {
    %c0_i32 = arith.constant 0 : i32
    %c0_i32_0 = arith.constant 0 : i32
    %c0_i32_1 = arith.constant 0 : i32
    return %arg0, %c0_i32, %c0_i32_0 : i32, i32, i32
  }
  func.func @transform_16(%arg0: i32) -> (i32, i32, i32) {
    %c0_i32 = arith.constant 0 : i32
    %c0_i32_0 = arith.constant 0 : i32
    %c0_i32_1 = arith.constant 0 : i32
    return %arg0, %c0_i32, %c0_i32_0 : i32, i32, i32
  }
}

</mosaic_0001>

<llo_original>
// kernel: squeeze.4
$region0: #{squeeze.4}
  %s0 = inlined_call_operand.vmem [shape: f32[1,72,256], index: 0, kind: input, shape index: {}]
  %s1 = inlined_call_operand.vmem [shape: f32[2,6,6,256], index: 1, kind: output, shape index: {}]
  %v2 = vld [vmem:[%s0] sm:$0xff]
  %3 = vst [vmem:[%s1] sm:$0x3f] %v2
  %s4 = scalar_lea.vmem %s1, 10
  %5 = vst [vmem:[%s4] sm:$0xc0] %v2
  %s6 = scalar_lea.vmem %s0, 8
  %v7 = vld [vmem:[%s6] sm:$0xff]
  %s8 = scalar_lea.vmem %s1, 8
  %9 = vst [vmem:[%s8] sm:$0x3f] %v7
  %s10 = scalar_lea.vmem %s1, 18
  %11 = vst [vmem:[%s10] sm:$0xc0] %v7
  %s12 = scalar_lea.vmem %s0, 16
  %v13 = vld [vmem:[%s12] sm:$0xff]
  %s14 = scalar_lea.vmem %s1, 18
  %15 = vst [vmem:[%s14] sm:$0xf] %v13
  %s16 = scalar_lea.vmem %s1, 28
  %17 = vst [vmem:[%s16] sm:$0xf0] %v13
  %s18 = scalar_lea.vmem %s0, 24
  %v19 = vld [vmem:[%s18] sm:$0xff]
  %s20 = scalar_lea.vmem %s1, 26
  %21 = vst [vmem:[%s20] sm:$0xf] %v19
  %s22 = scalar_lea.vmem %s1, 36
  %23 = vst [vmem:[%s22] sm:$0xf0] %v19
  %s24 = scalar_lea.vmem %s0, 32
  %v25 = vld [vmem:[%s24] sm:$0xff]
  %s26 = scalar_lea.vmem %s1, 36
  %27 = vst [vmem:[%s26] sm:$0x3] %v25
  %s28 = scalar_lea.vmem %s1, 46
  %29 = vst [vmem:[%s28] sm:$0xfc] %v25
  %s30 = scalar_lea.vmem %s0, 40
  %v31 = vld [vmem:[%s30] sm:$0xff]
  %s32 = scalar_lea.vmem %s1, 44
  %33 = vst [vmem:[%s32] sm:$0x3] %v31
  %s34 = scalar_lea.vmem %s1, 54
  %35 = vst [vmem:[%s34] sm:$0xfc] %v31
  %s36 = scalar_lea.vmem %s0, 48
  %v37 = vld [vmem:[%s36] sm:$0xff]
  %s38 = scalar_lea.vmem %s1, 64
  %39 = vst [vmem:[%s38] sm:$0x3f] %v37
  %s40 = scalar_lea.vmem %s1, 74
  %41 = vst [vmem:[%s40] sm:$0xc0] %v37
  %s42 = scalar_lea.vmem %s0, 56
  %v43 = vld [vmem:[%s42] sm:$0xff]
  %s44 = scalar_lea.vmem %s1, 72
  %45 = vst [vmem:[%s44] sm:$0x3f] %v43
  %s46 = scalar_lea.vmem %s1, 82
  %47 = vst [vmem:[%s46] sm:$0xc0] %v43
  %s48 = scalar_lea.vmem %s0, 64
  %v49 = vld [vmem:[%s48] sm:$0xff]
  %s50 = scalar_lea.vmem %s1, 82
  %51 = vst [vmem:[%s50] sm:$0xf] %v49
  %s52 = scalar_lea.vmem %s1, 92
  %53 = vst [vmem:[%s52] sm:$0xf0] %v49
  %s54 = scalar_lea.vmem %s0, 72
  %v55 = vld [vmem:[%s54] sm:$0xff]
  %s56 = scalar_lea.vmem %s1, 90
  %57 = vst [vmem:[%s56] sm:$0xf] %v55
  %s58 = scalar_lea.vmem %s1, 100
  %59 = vst [vmem:[%s58] sm:$0xf0] %v55
  %s60 = scalar_lea.vmem %s0, 80
  %v61 = vld [vmem:[%s60] sm:$0xff]
  %s62 = scalar_lea.vmem %s1, 100
  %63 = vst [vmem:[%s62] sm:$0x3] %v61
  %s64 = scalar_lea.vmem %s1, 110
  %65 = vst [vmem:[%s64] sm:$0xfc] %v61
  %s66 = scalar_lea.vmem %s0, 88
  %v67 = vld [vmem:[%s66] sm:$0xff]
  %s68 = scalar_lea.vmem %s1, 108
  %69 = vst [vmem:[%s68] sm:$0x3] %v67
  %s70 = scalar_lea.vmem %s1, 118
  %71 = vst [vmem:[%s70] sm:$0xfc] %v67
  %s72 = scalar_lea.vmem %s0, 96
  %v73 = vld [vmem:[%s72] sm:$0xff]
  %s74 = scalar_lea.vmem %s1, 128
  %75 = vst [vmem:[%s74] sm:$0x3f] %v73
  %s76 = scalar_lea.vmem %s1, 138
  %77 = vst [vmem:[%s76] sm:$0xc0] %v73
  %s78 = scalar_lea.vmem %s0, 104
  %v79 = vld [vmem:[%s78] sm:$0xff]
  %s80 = scalar_lea.vmem %s1, 136
  %81 = vst [vmem:[%s80] sm:$0x3f] %v79
  %s82 = scalar_lea.vmem %s1, 146
  %83 = vst [vmem:[%s82] sm:$0xc0] %v79
  %s84 = scalar_lea.vmem %s0, 112
  %v85 = vld [vmem:[%s84] sm:$0xff]
  %s86 = scalar_lea.vmem %s1, 146
  %87 = vst [vmem:[%s86] sm:$0xf] %v85
  %s88 = scalar_lea.vmem %s1, 156
  %89 = vst [vmem:[%s88] sm:$0xf0] %v85
  %s90 = scalar_lea.vmem %s0, 120
  %v91 = vld [vmem:[%s90] sm:$0xff]
  %s92 = scalar_lea.vmem %s1, 154
  %93 = vst [vmem:[%s92] sm:$0xf] %v91
  %s94 = scalar_lea.vmem %s1, 164
  %95 = vst [vmem:[%s94] sm:$0xf0] %v91
  %s96 = scalar_lea.vmem %s0, 128
  %v97 = vld [vmem:[%s96] sm:$0xff]
  %s98 = scalar_lea.vmem %s1, 164
  %99 = vst [vmem:[%s98] sm:$0x3] %v97
  %s100 = scalar_lea.vmem %s1, 174
  %101 = vst [vmem:[%s100] sm:$0xfc] %v97
  %s102 = scalar_lea.vmem %s0, 136
  %v103 = vld [vmem:[%s102] sm:$0xff]
  %s104 = scalar_lea.vmem %s1, 172
  %105 = vst [vmem:[%s104] sm:$0x3] %v103
  %s106 = scalar_lea.vmem %s1, 182
  %107 = vst [vmem:[%s106] sm:$0xfc] %v103

// kernel: _lambda_.1
$region0: #{_lambda_.1}
  #allocation0 [shape = 'u32[]', space=smem, size = 0x4, offset = 0x4, fixed_abs, tag = 'smem constant byte address 0x4 - core index']
  #allocation1 [shape = 'u32[144,128]{1,0:T(1,128)}', space=vmem, size = 0x12000, scoped, tag = 'internal scratch']
  %s0 = inlined_call_operand.vmem [shape: bf16[2,72,256], index: 0, kind: input, shape index: {}]
  %s1 = inlined_call_operand.vmem [shape: bf16[256,128], index: 1, kind: input, shape index: {}]
  %s2 = inlined_call_operand.vmem [shape: f32[1,128], index: 2, kind: input, shape index: {}]
  %s3 = inlined_call_operand.vmem [shape: f32[1,128], index: 3, kind: input, shape index: {}]
  %s4 = inlined_call_operand.vmem [shape: bf16[128,128], index: 4, kind: input, shape index: {}]
  %s5 = inlined_call_operand.vmem [shape: f32[1,128], index: 5, kind: input, shape index: {}]
  %s6 = inlined_call_operand.vmem [shape: f32[1,128], index: 6, kind: input, shape index: {}]
  %s7 = inlined_call_operand.vmem [shape: bf16[128,256], index: 7, kind: input, shape index: {}]
  %s8 = inlined_call_operand.vmem [shape: f32[1,256], index: 8, kind: input, shape index: {}]
  %s9 = inlined_call_operand.vmem [shape: f32[1,256], index: 9, kind: input, shape index: {}]
  %s10 = inlined_call_operand.vmem [shape: bf16[256,128], index: 10, kind: input, shape index: {}]
  %s11 = inlined_call_operand.vmem [shape: f32[1,128], index: 11, kind: input, shape index: {}]
  %s12 = inlined_call_operand.vmem [shape: f32[1,128], index: 12, kind: input, shape index: {}]
  %s13 = inlined_call_operand.vmem [shape: bf16[128,256], index: 13, kind: input, shape index: {}]
  %s14 = inlined_call_operand.vmem [shape: f32[1,256], index: 14, kind: input, shape index: {}]
  %s15 = inlined_call_operand.vmem [shape: f32[2,72,256], index: 15, kind: output, shape index: {0}]
  %s16 = inlined_call_operand.vmem [shape: f32[2,72,256], index: 16, kind: output, shape index: {1}]
  %17 = xla_tuple %s15, %s16
  %s18 = sld [smem:[#allocation0]]
  $region101: #{_lambda_.1} parent=0
    _
  %s20 = ssub.s32 1, %s18
  %s21 = scalar_select 0, %s20, %s18
  loop: start=0, step=1, limit=4
  $region2: #{_lambda_.1} parent=0 // loop_pre_header
    _
  $region3: #{_lambda_.1} parent=0 // loop_header
    %s23 = sphi 0, %s27
    %p24 = scmp.ge.s32.totalorder %s23, 4
    %s33 = sphi 0, %s35
    %s36 = sphi 0, %s33
    %s37 = sphi 0, %s36
    %s53 = sphi 0, %s37
    %s57 = sphi 0, %s57
    %s59 = sphi 0, %s57
    %s60 = sphi 0, %s59
    %s74 = sphi 0, %s60
    %s78 = sphi 0, %s78
    %s80 = sphi 0, %s78
    %s81 = sphi 0, %s80
    %s95 = sphi 0, %s81
    %s99 = sphi 0, %s99
    %s101 = sphi 0, %s99
    %s102 = sphi 0, %s101
    %s116 = sphi 0, %s102
    %s120 = sphi 0, %s120
    %s122 = sphi 0, %s120
    %s123 = sphi 0, %s122
    %s137 = sphi 0, %s123
    %s141 = sphi 0, %s141
    %s143 = sphi 0, %s141
    %s144 = sphi 0, %s143
    %s158 = sphi 0, %s144
    %s162 = sphi 0, %s162
    %s164 = sphi 0, %s162
    %s165 = sphi 0, %s164
    %s179 = sphi 0, %s165
    %s183 = sphi 0, %s183
    %s185 = sphi 0, %s183
    %s186 = sphi 0, %s185
    %s200 = sphi 0, %s186
    %s204 = sphi 0, %s204
    %s206 = sphi 0, %s204
    %s207 = sphi 0, %s206
    %s221 = sphi 0, %s207
    %s225 = sphi 0, %s225
    %s227 = sphi 0, %s225
    %s228 = sphi 0, %s227
    %s242 = sphi 0, %s228
    %s246 = sphi 0, %s246
    %s248 = sphi 0, %s246
    %s249 = sphi 0, %s248
    %s263 = sphi 0, %s249
    %s267 = sphi 0, %s267
    %s269 = sphi 0, %s267
    %s270 = sphi 0, %s269
    %s284 = sphi 0, %s270
    %s288 = sphi 0, %s288
    %s290 = sphi 0, %s288
    %s291 = sphi 0, %s290
    %s305 = sphi 0, %s291
    %s309 = sphi 0, %s309
    %s311 = sphi 0, %s309
    %s312 = sphi 0, %s311
    %s326 = sphi 0, %s312
    %s330 = sphi 0, %s330
    %s332 = sphi 0, %s330
    %s333 = sphi 0, %s332
    %s347 = sphi 0, %s333
    %s353 = sphi 0, %s355
    %s356 = sphi 0, %s353
    %s357 = sphi 0, %s356
    %s373 = sphi 0, %s357
    %s379 = sphi 0, %s381
    %s382 = sphi 0, %s379
    %s383 = sphi 0, %s382
    %s399 = sphi 0, %s383
  $region4: #{_lambda_.1} parent=0 // loop_header_branch
    %26 = sbr.rel (%p24) target = $region8
  $region5: #{_lambda_.1} parent=0 // loop_body
    %s28 = ssub.s32 %s23, 1
    %s29 = ssub.s32 %s23, 2
    %s30 = sadd.s32 %s23, 1
    %s31 = ssub.s32 %s23, %s30
    %p32 = scmp.eq.s32.totalorder %s31, 0
    %s34 = sadd.s32 %s33, 1
    %s35 = scalar_select %p32, %s33, %s34
    %p38 = pneg %p32
    %p39 = scmp.eq.s32.totalorder %s23, 1
    %p40 = por %p38, %p39
    %p41 = scmp.ne.s32.totalorder %s33, %s36
    %p42 = scmp.eq.s32.totalorder %s23, 0
    %p43 = por %p41, %p42
    %p44 = scmp.ne.s32.totalorder %s33, %s36
    %p45 = scmp.eq.s32.totalorder %s28, 1
    %p46 = por %p44, %p45
    %p47 = scmp.ne.s32.totalorder %s36, %s37
    %p48 = scmp.eq.s32.totalorder %s28, 0
    %p49 = por %p47, %p48
    %p50 = scmp.ne.s32.totalorder %s36, %s37
    %p51 = scmp.eq.s32.totalorder %s29, 1
    %p52 = por %p50, %p51
    %p54 = scmp.ne.s32.totalorder %s37, %s53
    %p55 = scmp.eq.s32.totalorder %s29, 0
    %p56 = por %p54, %p55
    %s58 = sadd.s32 %s57, 1
    %p61 = scmp.eq.s32.totalorder %s23, 1
    %p62 = scmp.ne.s32.totalorder %s57, %s59
    %p63 = scmp.eq.s32.totalorder %s23, 0
    %p64 = por %p62, %p63
    %p65 = scmp.ne.s32.totalorder %s57, %s59
    %p66 = scmp.eq.s32.totalorder %s28, 1
    %p67 = por %p65, %p66
    %p68 = scmp.ne.s32.totalorder %s59, %s60
    %p69 = scmp.eq.s32.totalorder %s28, 0
    %p70 = por %p68, %p69
    %p71 = scmp.ne.s32.totalorder %s59, %s60
    %p72 = scmp.eq.s32.totalorder %s29, 1
    %p73 = por %p71, %p72
    %p75 = scmp.ne.s32.totalorder %s60, %s74
    %p76 = scmp.eq.s32.totalorder %s29, 0
    %p77 = por %p75, %p76
    %s79 = sadd.s32 %s78, 1
    %p82 = scmp.eq.s32.totalorder %s23, 1
    %p83 = scmp.ne.s32.totalorder %s78, %s80
    %p84 = scmp.eq.s32.totalorder %s23, 0
    %p85 = por %p83, %p84
    %p86 = scmp.ne.s32.totalorder %s78, %s80
    %p87 = scmp.eq.s32.totalorder %s28, 1
    %p88 = por %p86, %p87
    %p89 = scmp.ne.s32.totalorder %s80, %s81
    %p90 = scmp.eq.s32.totalorder %s28, 0
    %p91 = por %p89, %p90
    %p92 = scmp.ne.s32.totalorder %s80, %s81
    %p93 = scmp.eq.s32.totalorder %s29, 1
    %p94 = por %p92, %p93
    %p96 = scmp.ne.s32.totalorder %s81, %s95
    %p97 = scmp.eq.s32.totalorder %s29, 0
    %p98 = por %p96, %p97
    %s100 = sadd.s32 %s99, 1
    %p103 = scmp.eq.s32.totalorder %s23, 1
    %p104 = scmp.ne.s32.totalorder %s99, %s101
    %p105 = scmp.eq.s32.totalorder %s23, 0
    %p106 = por %p104, %p105
    %p107 = scmp.ne.s32.totalorder %s99, %s101
    %p108 = scmp.eq.s32.totalorder %s28, 1
    %p109 = por %p107, %p108
    %p110 = scmp.ne.s32.totalorder %s101, %s102
    %p111 = scmp.eq.s32.totalorder %s28, 0
    %p112 = por %p110, %p111
    %p113 = scmp.ne.s32.totalorder %s101, %s102
    %p114 = scmp.eq.s32.totalorder %s29, 1
    %p115 = por %p113, %p114
    %p117 = scmp.ne.s32.totalorder %s102, %s116
    %p118 = scmp.eq.s32.totalorder %s29, 0
    %p119 = por %p117, %p118
    %s121 = sadd.s32 %s120, 1
    %p124 = scmp.eq.s32.totalorder %s23, 1
    %p125 = scmp.ne.s32.totalorder %s120, %s122
    %p126 = scmp.eq.s32.totalorder %s23, 0
    %p127 = por %p125, %p126
    %p128 = scmp.ne.s32.totalorder %s120, %s122
    %p129 = scmp.eq.s32.totalorder %s28, 1
    %p130 = por %p128, %p129
    %p131 = scmp.ne.s32.totalorder %s122, %s123
    %p132 = scmp.eq.s32.totalorder %s28, 0
    %p133 = por %p131, %p132
    %p134 = scmp.ne.s32.totalorder %s122, %s123
    %p135 = scmp.eq.s32.totalorder %s29, 1
    %p136 = por %p134, %p135
    %p138 = scmp.ne.s32.totalorder %s123, %s137
    %p139 = scmp.eq.s32.totalorder %s29, 0
    %p140 = por %p138, %p139
    %s142 = sadd.s32 %s141, 1
    %p145 = scmp.eq.s32.totalorder %s23, 1
    %p146 = scmp.ne.s32.totalorder %s141, %s143
    %p147 = scmp.eq.s32.totalorder %s23, 0
    %p148 = por %p146, %p147
    %p149 = scmp.ne.s32.totalorder %s141, %s143
    %p150 = scmp.eq.s32.totalorder %s28, 1
    %p151 = por %p149, %p150
    %p152 = scmp.ne.s32.totalorder %s143, %s144
    %p153 = scmp.eq.s32.totalorder %s28, 0
    %p154 = por %p152, %p153
    %p155 = scmp.ne.s32.totalorder %s143, %s144
    %p156 = scmp.eq.s32.totalorder %s29, 1
    %p157 = por %p155, %p156
    %p159 = scmp.ne.s32.totalorder %s144, %s158
    %p160 = scmp.eq.s32.totalorder %s29, 0
    %p161 = por %p159, %p160
    %s163 = sadd.s32 %s162, 1
    %p166 = scmp.eq.s32.totalorder %s23, 1
    %p167 = scmp.ne.s32.totalorder %s162, %s164
    %p168 = scmp.eq.s32.totalorder %s23, 0
    %p169 = por %p167, %p168
    %p170 = scmp.ne.s32.totalorder %s162, %s164
    %p171 = scmp.eq.s32.totalorder %s28, 1
    %p172 = por %p170, %p171
    %p173 = scmp.ne.s32.totalorder %s164, %s165
    %p174 = scmp.eq.s32.totalorder %s28, 0
    %p175 = por %p173, %p174
    %p176 = scmp.ne.s32.totalorder %s164, %s165
    %p177 = scmp.eq.s32.totalorder %s29, 1
    %p178 = por %p176, %p177
    %p180 = scmp.ne.s32.totalorder %s165, %s179
    %p181 = scmp.eq.s32.totalorder %s29, 0
    %p182 = por %p180, %p181
    %s184 = sadd.s32 %s183, 1
    %p187 = scmp.eq.s32.totalorder %s23, 1
    %p188 = scmp.ne.s32.totalorder %s183, %s185
    %p189 = scmp.eq.s32.totalorder %s23, 0
    %p190 = por %p188, %p189
    %p191 = scmp.ne.s32.totalorder %s183, %s185
    %p192 = scmp.eq.s32.totalorder %s28, 1
    %p193 = por %p191, %p192
    %p194 = scmp.ne.s32.totalorder %s185, %s186
    %p195 = scmp.eq.s32.totalorder %s28, 0
    %p196 = por %p194, %p195
    %p197 = scmp.ne.s32.totalorder %s185, %s186
    %p198 = scmp.eq.s32.totalorder %s29, 1
    %p199 = por %p197, %p198
    %p201 = scmp.ne.s32.totalorder %s186, %s200
    %p202 = scmp.eq.s32.totalorder %s29, 0
    %p203 = por %p201, %p202
    %s205 = sadd.s32 %s204, 1
    %p208 = scmp.eq.s32.totalorder %s23, 1
    %p209 = scmp.ne.s32.totalorder %s204, %s206
    %p210 = scmp.eq.s32.totalorder %s23, 0
    %p211 = por %p209, %p210
    %p212 = scmp.ne.s32.totalorder %s204, %s206
    %p213 = scmp.eq.s32.totalorder %s28, 1
    %p214 = por %p212, %p213
    %p215 = scmp.ne.s32.totalorder %s206, %s207
    %p216 = scmp.eq.s32.totalorder %s28, 0
    %p217 = por %p215, %p216
    %p218 = scmp.ne.s32.totalorder %s206, %s207
    %p219 = scmp.eq.s32.totalorder %s29, 1
    %p220 = por %p218, %p219
    %p222 = scmp.ne.s32.totalorder %s207, %s221
    %p223 = scmp.eq.s32.totalorder %s29, 0
    %p224 = por %p222, %p223
    %s226 = sadd.s32 %s225, 1
    %p229 = scmp.eq.s32.totalorder %s23, 1
    %p230 = scmp.ne.s32.totalorder %s225, %s227
    %p231 = scmp.eq.s32.totalorder %s23, 0
    %p232 = por %p230, %p231
    %p233 = scmp.ne.s32.totalorder %s225, %s227
    %p234 = scmp.eq.s32.totalorder %s28, 1
    %p235 = por %p233, %p234
    %p236 = scmp.ne.s32.totalorder %s227, %s228
    %p237 = scmp.eq.s32.totalorder %s28, 0
    %p238 = por %p236, %p237
    %p239 = scmp.ne.s32.totalorder %s227, %s228
    %p240 = scmp.eq.s32.totalorder %s29, 1
    %p241 = por %p239, %p240
    %p243 = scmp.ne.s32.totalorder %s228, %s242
    %p244 = scmp.eq.s32.totalorder %s29, 0
    %p245 = por %p243, %p244
    %s247 = sadd.s32 %s246, 1
    %p250 = scmp.eq.s32.totalorder %s23, 1
    %p251 = scmp.ne.s32.totalorder %s246, %s248
    %p252 = scmp.eq.s32.totalorder %s23, 0
    %p253 = por %p251, %p252
    %p254 = scmp.ne.s32.totalorder %s246, %s248
    %p255 = scmp.eq.s32.totalorder %s28, 1
    %p256 = por %p254, %p255
    %p257 = scmp.ne.s32.totalorder %s248, %s249
    %p258 = scmp.eq.s32.totalorder %s28, 0
    %p259 = por %p257, %p258
    %p260 = scmp.ne.s32.totalorder %s248, %s249
    %p261 = scmp.eq.s32.totalorder %s29, 1
    %p262 = por %p260, %p261
    %p264 = scmp.ne.s32.totalorder %s249, %s263
    %p265 = scmp.eq.s32.totalorder %s29, 0
    %p266 = por %p264, %p265
    %s268 = sadd.s32 %s267, 1
    %p271 = scmp.eq.s32.totalorder %s23, 1
    %p272 = scmp.ne.s32.totalorder %s267, %s269
    %p273 = scmp.eq.s32.totalorder %s23, 0
    %p274 = por %p272, %p273
    %p275 = scmp.ne.s32.totalorder %s267, %s269
    %p276 = scmp.eq.s32.totalorder %s28, 1
    %p277 = por %p275, %p276
    %p278 = scmp.ne.s32.totalorder %s269, %s270
    %p279 = scmp.eq.s32.totalorder %s28, 0
    %p280 = por %p278, %p279
    %p281 = scmp.ne.s32.totalorder %s269, %s270
    %p282 = scmp.eq.s32.totalorder %s29, 1
    %p283 = por %p281, %p282
    %p285 = scmp.ne.s32.totalorder %s270, %s284
    %p286 = scmp.eq.s32.totalorder %s29, 0
    %p287 = por %p285, %p286
    %s289 = sadd.s32 %s288, 1
    %p292 = scmp.eq.s32.totalorder %s23, 1
    %p293 = scmp.ne.s32.totalorder %s288, %s290
    %p294 = scmp.eq.s32.totalorder %s23, 0
    %p295 = por %p293, %p294
    %p296 = scmp.ne.s32.totalorder %s288, %s290
    %p297 = scmp.eq.s32.totalorder %s28, 1
    %p298 = por %p296, %p297
    %p299 = scmp.ne.s32.totalorder %s290, %s291
    %p300 = scmp.eq.s32.totalorder %s28, 0
    %p301 = por %p299, %p300
    %p302 = scmp.ne.s32.totalorder %s290, %s291
    %p303 = scmp.eq.s32.totalorder %s29, 1
    %p304 = por %p302, %p303
    %p306 = scmp.ne.s32.totalorder %s291, %s305
    %p307 = scmp.eq.s32.totalorder %s29, 0
    %p308 = por %p306, %p307
    %s310 = sadd.s32 %s309, 1
    %p313 = scmp.eq.s32.totalorder %s23, 1
    %p314 = scmp.ne.s32.totalorder %s309, %s311
    %p315 = scmp.eq.s32.totalorder %s23, 0
    %p316 = por %p314, %p315
    %p317 = scmp.ne.s32.totalorder %s309, %s311
    %p318 = scmp.eq.s32.totalorder %s28, 1
    %p319 = por %p317, %p318
    %p320 = scmp.ne.s32.totalorder %s311, %s312
    %p321 = scmp.eq.s32.totalorder %s28, 0
    %p322 = por %p320, %p321
    %p323 = scmp.ne.s32.totalorder %s311, %s312
    %p324 = scmp.eq.s32.totalorder %s29, 1
    %p325 = por %p323, %p324
    %p327 = scmp.ne.s32.totalorder %s312, %s326
    %p328 = scmp.eq.s32.totalorder %s29, 0
    %p329 = por %p327, %p328
    %s331 = sadd.s32 %s330, 1
    %p334 = scmp.eq.s32.totalorder %s23, 1
    %p335 = scmp.ne.s32.totalorder %s330, %s332
    %p336 = scmp.eq.s32.totalorder %s23, 0
    %p337 = por %p335, %p336
    %p338 = scmp.ne.s32.totalorder %s330, %s332
    %p339 = scmp.eq.s32.totalorder %s28, 1
    %p340 = por %p338, %p339
    %p341 = scmp.ne.s32.totalorder %s332, %s333
    %p342 = scmp.eq.s32.totalorder %s28, 0
    %p343 = por %p341, %p342
    %p344 = scmp.ne.s32.totalorder %s332, %s333
    %p345 = scmp.eq.s32.totalorder %s29, 1
    %p346 = por %p344, %p345
    %p348 = scmp.ne.s32.totalorder %s333, %s347
    %p349 = scmp.eq.s32.totalorder %s29, 0
    %p350 = por %p348, %p349
    %s351 = ssub.s32 %s23, %s30
    %p352 = scmp.eq.s32.totalorder %s351, 0
    %s354 = sadd.s32 %s353, 1
    %s355 = scalar_select %p352, %s353, %s354
    %p358 = pneg %p352
    %p359 = scmp.eq.s32.totalorder %s23, 1
    %p360 = por %p358, %p359
    %p361 = scmp.ne.s32.totalorder %s353, %s356
    %p362 = scmp.eq.s32.totalorder %s23, 0
    %p363 = por %p361, %p362
    %p364 = scmp.ne.s32.totalorder %s353, %s356
    %p365 = scmp.eq.s32.totalorder %s28, 1
    %p366 = por %p364, %p365
    %p367 = scmp.ne.s32.totalorder %s356, %s357
    %p368 = scmp.eq.s32.totalorder %s28, 0
    %p369 = por %p367, %p368
    %p370 = scmp.ne.s32.totalorder %s356, %s357
    %p371 = scmp.eq.s32.totalorder %s29, 1
    %p372 = por %p370, %p371
    %p374 = scmp.ne.s32.totalorder %s357, %s373
    %p375 = scmp.eq.s32.totalorder %s29, 0
    %p376 = por %p374, %p375
    %s377 = ssub.s32 %s23, %s30
    %p378 = scmp.eq.s32.totalorder %s377, 0
    %s380 = sadd.s32 %s379, 1
    %s381 = scalar_select %p378, %s379, %s380
    %p384 = pneg %p378
    %p385 = scmp.eq.s32.totalorder %s23, 1
    %p386 = por %p384, %p385
    %p387 = scmp.ne.s32.totalorder %s379, %s382
    %p388 = scmp.eq.s32.totalorder %s23, 0
    %p389 = por %p387, %p388
    %p390 = scmp.ne.s32.totalorder %s379, %s382
    %p391 = scmp.eq.s32.totalorder %s28, 1
    %p392 = por %p390, %p391
    %p393 = scmp.ne.s32.totalorder %s382, %s383
    %p394 = scmp.eq.s32.totalorder %s28, 0
    %p395 = por %p393, %p394
    %p396 = scmp.ne.s32.totalorder %s382, %s383
    %p397 = scmp.eq.s32.totalorder %s29, 1
    %p398 = por %p396, %p397
    %p400 = scmp.ne.s32.totalorder %s383, %s399
    %p401 = scmp.eq.s32.totalorder %s29, 0
    %p402 = por %p400, %p401
    %p403 = scmp.le.s32.totalorder 1, %s23
    %p404 = scmp.lt.s32.totalorder %s23, 3
    %p405 = pnand %p403, %p404
    %p406 = pneg %p405
    // Predicated region
    $region9: #{_lambda_.1} parent=5 // pred_check
      _
    $region10: #{_lambda_.1} parent=5 // pred_check_branch
      %408 = sbr.rel (%p405) target = $region12
    $region11: #{_lambda_.1} parent=5 // pred_region
      %s409 = ssub.s32 %s23, 1
      // Predicated region
      $region13: #{_lambda_.1} parent=11 // pred_check
        %p410 = pneg %p70
      $region14: #{_lambda_.1} parent=11 // pred_check_branch
        %412 = sbr.rel (%p410) target = $region16
      $region15: #{_lambda_.1} parent=11 // pred_region
        _
      $region16: #{_lambda_.1} parent=11 // pred_fallthru
        _
      // Predicated region
      $region17: #{_lambda_.1} parent=11 // pred_check
        %p413 = pneg %p91
      $region18: #{_lambda_.1} parent=11 // pred_check_branch
        %415 = sbr.rel (%p413) target = $region20
      $region19: #{_lambda_.1} parent=11 // pred_region
        _
      $region20: #{_lambda_.1} parent=11 // pred_fallthru
        _
      // Predicated region
      $region21: #{_lambda_.1} parent=11 // pred_check
        %p416 = pneg %p112
      $region22: #{_lambda_.1} parent=11 // pred_check_branch
        %418 = sbr.rel (%p416) target = $region24
      $region23: #{_lambda_.1} parent=11 // pred_region
        _
      $region24: #{_lambda_.1} parent=11 // pred_fallthru
        _
      // Predicated region
      $region25: #{_lambda_.1} parent=11 // pred_check
        %p419 = pneg %p133
      $region26: #{_lambda_.1} parent=11 // pred_check_branch
        %421 = sbr.rel (%p419) target = $region28
      $region27: #{_lambda_.1} parent=11 // pred_region
        _
      $region28: #{_lambda_.1} parent=11 // pred_fallthru
        _
      // Predicated region
      $region29: #{_lambda_.1} parent=11 // pred_check
        %p422 = pneg %p154
      $region30: #{_lambda_.1} parent=11 // pred_check_branch
        %424 = sbr.rel (%p422) target = $region32
      $region31: #{_lambda_.1} parent=11 // pred_region
        _
      $region32: #{_lambda_.1} parent=11 // pred_fallthru
        _
      // Predicated region
      $region33: #{_lambda_.1} parent=11 // pred_check
        %p425 = pneg %p175
      $region34: #{_lambda_.1} parent=11 // pred_check_branch
        %427 = sbr.rel (%p425) target = $region36
      $region35: #{_lambda_.1} parent=11 // pred_region
        _
      $region36: #{_lambda_.1} parent=11 // pred_fallthru
        _
      // Predicated region
      $region37: #{_lambda_.1} parent=11 // pred_check
        %p428 = pneg %p196
      $region38: #{_lambda_.1} parent=11 // pred_check_branch
        %430 = sbr.rel (%p428) target = $region40
      $region39: #{_lambda_.1} parent=11 // pred_region
        _
      $region40: #{_lambda_.1} parent=11 // pred_fallthru
        _
      // Predicated region
      $region41: #{_lambda_.1} parent=11 // pred_check
        %p431 = pneg %p217
      $region42: #{_lambda_.1} parent=11 // pred_check_branch
        %433 = sbr.rel (%p431) target = $region44
      $region43: #{_lambda_.1} parent=11 // pred_region
        _
      $region44: #{_lambda_.1} parent=11 // pred_fallthru
        _
      // Predicated region
      $region45: #{_lambda_.1} parent=11 // pred_check
        %p434 = pneg %p238
      $region46: #{_lambda_.1} parent=11 // pred_check_branch
        %436 = sbr.rel (%p434) target = $region48
      $region47: #{_lambda_.1} parent=11 // pred_region
        _
      $region48: #{_lambda_.1} parent=11 // pred_fallthru
        _
      // Predicated region
      $region49: #{_lambda_.1} parent=11 // pred_check
        %p437 = pneg %p259
      $region50: #{_lambda_.1} parent=11 // pred_check_branch
        %439 = sbr.rel (%p437) target = $region52
      $region51: #{_lambda_.1} parent=11 // pred_region
        _
      $region52: #{_lambda_.1} parent=11 // pred_fallthru
        _
      // Predicated region
      $region53: #{_lambda_.1} parent=11 // pred_check
        %p440 = pneg %p280
      $region54: #{_lambda_.1} parent=11 // pred_check_branch
        %442 = sbr.rel (%p440) target = $region56
      $region55: #{_lambda_.1} parent=11 // pred_region
        _
      $region56: #{_lambda_.1} parent=11 // pred_fallthru
        _
      // Predicated region
      $region57: #{_lambda_.1} parent=11 // pred_check
        %p443 = pneg %p301
      $region58: #{_lambda_.1} parent=11 // pred_check_branch
        %445 = sbr.rel (%p443) target = $region60
      $region59: #{_lambda_.1} parent=11 // pred_region
        _
      $region60: #{_lambda_.1} parent=11 // pred_fallthru
        _
      // Predicated region
      $region61: #{_lambda_.1} parent=11 // pred_check
        %p446 = pneg %p322
      $region62: #{_lambda_.1} parent=11 // pred_check_branch
        %448 = sbr.rel (%p446) target = $region64
      $region63: #{_lambda_.1} parent=11 // pred_region
        _
      $region64: #{_lambda_.1} parent=11 // pred_fallthru
        _
      // Predicated region
      $region65: #{_lambda_.1} parent=11 // pred_check
        %p449 = pneg %p343
      $region66: #{_lambda_.1} parent=11 // pred_check_branch
        %451 = sbr.rel (%p449) target = $region68
      $region67: #{_lambda_.1} parent=11 // pred_region
        _
      $region68: #{_lambda_.1} parent=11 // pred_fallthru
        _
    $region12: #{_lambda_.1} parent=5 // pred_fallthru
      _
    %p452 = scmp.lt.s32.totalorder %s23, 2
    // Predicated region
    $region69: #{_lambda_.1} parent=5 // pred_check
      %p453 = pneg %p452
    $region70: #{_lambda_.1} parent=5 // pred_check_branch
      %455 = sbr.rel (%p453) target = $region72
    $region71: #{_lambda_.1} parent=5 // pred_region
      // Predicated region
      $region73: #{_lambda_.1} parent=71 // pred_check
        %p456 = pneg %p43
      $region74: #{_lambda_.1} parent=71 // pred_check_branch
        %458 = sbr.rel (%p456) target = $region76
      $region75: #{_lambda_.1} parent=71 // pred_region
        %p459 = scmp.lt.s32.totalorder %s23, 1
        %s460 = scalar_select %p459, %s23, 1
        %s461 = smul.addr %s460, 18
        %s462 = smul.addr %s461, 4
        %s463 = scalar_lea.vmem %s0, %s462
      $region76: #{_lambda_.1} parent=71 // pred_fallthru
        _
    $region72: #{_lambda_.1} parent=5 // pred_fallthru
      _
    %p464 = scmp.le.s32.totalorder 1, %s23
    %p465 = scmp.lt.s32.totalorder %s23, 3
    %p466 = pnand %p464, %p465
    %p467 = pneg %p466
    // Predicated region
    $region77: #{_lambda_.1} parent=5 // pred_check
      _
    $region78: #{_lambda_.1} parent=5 // pred_check_branch
      %469 = sbr.rel (%p466) target = $region80
    $region79: #{_lambda_.1} parent=5 // pred_region
      %s470 = ssub.s32 %s23, 1
      %p471 = scmp.lt.s32.totalorder %s28, 1
      %s472 = scalar_select %p471, %s28, 1
      %s473 = smul.addr %s472, 18
      %s474 = smul.addr %s473, 4
      %s475 = scalar_lea.vmem %s0, %s474
      %p476 = pneg %p49
      %p477 = pneg %p46
      %p478 = pneg %p70
      %p479 = pneg %p67
      %p480 = pneg %p91
      %p481 = pneg %p88
      %p482 = pneg %p112
      %p483 = pneg %p109
      %p484 = pneg %p133
      %p485 = pneg %p130
      %p486 = pneg %p154
      %p487 = pneg %p151
      %p488 = pneg %p175
      %p489 = pneg %p172
      %p490 = pneg %p196
      %p491 = pneg %p193
      %p492 = pneg %p217
      %p493 = pneg %p214
      %p494 = pneg %p238
      %p495 = pneg %p235
      %p496 = pneg %p259
      %p497 = pneg %p256
      %p498 = pneg %p280
      %p499 = pneg %p277
      %p500 = pneg %p301
      %p501 = pneg %p298
      %p502 = pneg %p322
      %p503 = pneg %p319
      %p504 = pneg %p343
      %p505 = pneg %p340
      %p506 = pneg %p369
      %p507 = pneg %p366
      %p508 = scmp.lt.s32.totalorder %s28, 1
      %s509 = scalar_select %p508, %s28, 1
      %s510 = smul.addr %s509, 18
      %s511 = smul.addr %s510, 8
      %s512 = scalar_lea.vmem %s15, %s511
      %p513 = pneg %p395
      %p514 = pneg %p392
      %p515 = scmp.lt.s32.totalorder %s28, 1
      %s516 = scalar_select %p515, %s28, 1
      %s517 = smul.addr %s516, 18
      %s518 = smul.addr %s517, 8
      %s519 = scalar_lea.vmem %s16, %s518
      %p520 = scmp.lt.s32.totalorder %s28, 1
      %s521 = scalar_select %p520, %s28, 1
      %s522 = smul.addr %s521, 18
      %s523 = smul.addr %s522, 4
      %s524 = scalar_lea.vmem %s0, %s523
      %p525 = scmp.lt.s32.totalorder %s28, 1
      %s526 = scalar_select %p525, %s28, 1
      %s527 = smul.addr %s526, 18
      %s528 = smul.addr %s527, 8
      %s529 = scalar_lea.vmem %s15, %s528
      %p530 = scmp.lt.s32.totalorder %s28, 1
      %s531 = scalar_select %p530, %s28, 1
      %s532 = smul.addr %s531, 18
      %s533 = smul.addr %s532, 8
      %s534 = scalar_lea.vmem %s16, %s533
      %v536 = vld [vmem:[%s524] sm:$0xff]
      %v537 = vld [vmem:[%s524 + $0x8] sm:$0xff]
      %v538 = vld [vmem:[%s524 + $0x10] sm:$0xff]
      %v539 = vld [vmem:[%s524 + $0x18] sm:$0xff]
      %v540 = vld [vmem:[%s524 + $0x20] sm:$0xff]
      %v541 = vld [vmem:[%s524 + $0x28] sm:$0xff]
      %v542 = vld [vmem:[%s524 + $0x30] sm:$0xff]
      %v543 = vld [vmem:[%s524 + $0x38] sm:$0xff]
      %v544 = vld [vmem:[%s524 + $0x40] sm:$0xff]
      %v545 = vld [vmem:[%s1] sm:$0xf]
      %v546 = vld [vmem:[%s1 + $0x4] sm:$0xf]
      %v547 = vld [vmem:[%s1 + $0x8] sm:$0xf]
      %v548 = vld [vmem:[%s1 + $0xc] sm:$0xf]
      %v549 = vld [vmem:[%s1 + $0x10] sm:$0xf]
      %v550 = vld [vmem:[%s1 + $0x14] sm:$0xf]
      %v551 = vld [vmem:[%s1 + $0x18] sm:$0xf]
      %v552 = vld [vmem:[%s1 + $0x1c] sm:$0xf]
      %v553 = vld [vmem:[%s1 + $0x20] sm:$0xf]
      %v554 = vld [vmem:[%s1 + $0x24] sm:$0xf]
      %v555 = vld [vmem:[%s1 + $0x28] sm:$0xf]
      %v556 = vld [vmem:[%s1 + $0x2c] sm:$0xf]
      %v557 = vld [vmem:[%s1 + $0x30] sm:$0xf]
      %v558 = vld [vmem:[%s1 + $0x34] sm:$0xf]
      %v559 = vld [vmem:[%s1 + $0x38] sm:$0xf]
      %v560 = vld [vmem:[%s1 + $0x3c] sm:$0xf]
      %v561 = vld [vmem:[%s1 + $0x40] sm:$0xf]
      %v562 = vld [vmem:[%s1 + $0x44] sm:$0xf]
      %v563 = vld [vmem:[%s1 + $0x48] sm:$0xf]
      %v564 = vld [vmem:[%s1 + $0x4c] sm:$0xf]
      %v565 = vld [vmem:[%s1 + $0x50] sm:$0xf]
      %v566 = vld [vmem:[%s1 + $0x54] sm:$0xf]
      %v567 = vld [vmem:[%s1 + $0x58] sm:$0xf]
      %v568 = vld [vmem:[%s1 + $0x5c] sm:$0xf]
      %v569 = vld [vmem:[%s1 + $0x60] sm:$0xf]
      %v570 = vld [vmem:[%s1 + $0x64] sm:$0xf]
      %v571 = vld [vmem:[%s1 + $0x68] sm:$0xf]
      %v572 = vld [vmem:[%s1 + $0x6c] sm:$0xf]
      %v573 = vld [vmem:[%s1 + $0x70] sm:$0xf]
      %v574 = vld [vmem:[%s1 + $0x74] sm:$0xf]
      %v575 = vld [vmem:[%s1 + $0x78] sm:$0xf]
      %v576 = vld [vmem:[%s1 + $0x7c] sm:$0xf]
      %v586 = vunpack.c.l.b16 %v536
      %v587 = vunpack.c.h.b16 %v536
      %v588 = vunpack.c.l.b16 %v537
      %v589 = vunpack.c.h.b16 %v537
      %v590 = vunpack.c.l.b16 %v538
      %v591 = vunpack.c.h.b16 %v538
      %v592 = vunpack.c.l.b16 %v539
      %v593 = vunpack.c.h.b16 %v539
      %v594 = vunpack.c.l.b16 %v540
      %v595 = vunpack.c.h.b16 %v540
      %v596 = vunpack.c.l.b16 %v541
      %v597 = vunpack.c.h.b16 %v541
      %v598 = vunpack.c.l.b16 %v542
      %v599 = vunpack.c.h.b16 %v542
      %v600 = vunpack.c.l.b16 %v543
      %v601 = vunpack.c.h.b16 %v543
      %v602 = vunpack.c.l.b16 %v544
      %v603 = vunpack.c.h.b16 %v544
      %v604 = vpack.c.b16 %v588, %v586
      %v605 = vpack.c.b16 %v589, %v587
      %v606 = vpack.c.b16 %v592, %v590
      %v607 = vpack.c.b16 %v593, %v591
      %v608 = vpack.c.b16 %v596, %v594
      %v609 = vpack.c.b16 %v597, %v595
      %v610 = vpack.c.b16 %v600, %v598
      %v611 = vpack.c.b16 %v601, %v599
      %v612 = vpack.c.b16 %v602, %v602
      %v613 = vpack.c.b16 %v603, %v603
      %v656 = vunpack.c.l.b16 %v545
      %v657 = vunpack.c.l.b16 %v546
      %v658 = vunpack.c.l.b16 %v547
      %v659 = vunpack.c.l.b16 %v548
      %v660 = vunpack.c.l.b16 %v549
      %v661 = vunpack.c.l.b16 %v550
      %v662 = vunpack.c.l.b16 %v551
      %v663 = vunpack.c.l.b16 %v552
      %v664 = vunpack.c.l.b16 %v553
      %v665 = vunpack.c.l.b16 %v554
      %v666 = vunpack.c.l.b16 %v555
      %v667 = vunpack.c.l.b16 %v556
      %v668 = vunpack.c.l.b16 %v557
      %v669 = vunpack.c.l.b16 %v558
      %v670 = vunpack.c.l.b16 %v559
      %v671 = vunpack.c.l.b16 %v560
      %v672 = vunpack.c.l.b16 %v561
      %v673 = vunpack.c.l.b16 %v562
      %v674 = vunpack.c.l.b16 %v563
      %v675 = vunpack.c.l.b16 %v564
      %v676 = vunpack.c.l.b16 %v565
      %v677 = vunpack.c.l.b16 %v566
      %v678 = vunpack.c.l.b16 %v567
      %v679 = vunpack.c.l.b16 %v568
      %v680 = vunpack.c.l.b16 %v569
      %v681 = vunpack.c.l.b16 %v570
      %v682 = vunpack.c.l.b16 %v571
      %v683 = vunpack.c.l.b16 %v572
      %v684 = vunpack.c.l.b16 %v573
      %v685 = vunpack.c.l.b16 %v574
      %v686 = vunpack.c.l.b16 %v575
      %v687 = vunpack.c.l.b16 %v576
      %v688 = vpack.c.b16 %v657, %v656
      %v689 = vpack.c.b16 %v659, %v658
      %v690 = vpack.c.b16 %v661, %v660
      %v691 = vpack.c.b16 %v663, %v662
      %v692 = vpack.c.b16 %v665, %v664
      %v693 = vpack.c.b16 %v667, %v666
      %v694 = vpack.c.b16 %v669, %v668
      %v695 = vpack.c.b16 %v671, %v670
      %v696 = vpack.c.b16 %v673, %v672
      %v697 = vpack.c.b16 %v675, %v674
      %v698 = vpack.c.b16 %v677, %v676
      %v699 = vpack.c.b16 %v679, %v678
      %v700 = vpack.c.b16 %v681, %v680
      %v701 = vpack.c.b16 %v683, %v682
      %v702 = vpack.c.b16 %v685, %v684
      %v703 = vpack.c.b16 %v687, %v686
      %720 = vmatprep.subr.bf16.mxu0 0
      %721 = vmatpush1.bf16.msra.mxu0 %v695
      %722 = vmatprep.subr.bf16.mxu0 0
      %723 = vmatpush1.bf16.msra.mxu0 %v694
      %724 = vmatprep.subr.bf16.mxu0 0
      %725 = vmatpush1.bf16.msra.mxu0 %v693
      %726 = vmatprep.subr.bf16.mxu0 0
      %727 = vmatpush1.bf16.msra.mxu0 %v692
      %728 = vmatprep.subr.bf16.mxu0 0
      %729 = vmatpush1.bf16.msra.mxu0 %v691
      %730 = vmatprep.subr.bf16.mxu0 0
      %731 = vmatpush1.bf16.msra.mxu0 %v690
      %732 = vmatprep.subr.bf16.mxu0 0
      %733 = vmatpush1.bf16.msra.mxu0 %v689
      %734 = vmatprep.subr.bf16.mxu0 0
      %735 = vmatpush1.bf16.msra.mxu0 %v688
      %736 = vmatprep.subr.bf16.mxu0 0
      %737 = vmatpush2.bf16.msra.mxu0 %v703
      %738 = vmatprep.subr.bf16.mxu0 0
      %739 = vmatpush2.bf16.msra.mxu0 %v702
      %740 = vmatprep.subr.bf16.mxu0 0
      %741 = vmatpush2.bf16.msra.mxu0 %v701
      %742 = vmatprep.subr.bf16.mxu0 0
      %743 = vmatpush2.bf16.msra.mxu0 %v700
      %744 = vmatprep.subr.bf16.mxu0 0
      %745 = vmatpush2.bf16.msra.mxu0 %v699
      %746 = vmatprep.subr.bf16.mxu0 0
      %747 = vmatpush2.bf16.msra.mxu0 %v698
      %748 = vmatprep.subr.bf16.mxu0 0
      %749 = vmatpush2.bf16.msra.mxu0 %v697
      %750 = vmatprep.subr.bf16.mxu0 0
      %751 = vmatpush2.bf16.msra.mxu0 %v696
      %752 = vmatprep.mubr.bf16.mxu0 %v605
      %753 = vmatmul.mubr.bf16.gmra.mxu0 %v604
      %v754 = vpop.f32.mrf.mxu0
      %v755 = vadd.f32 0.0, %v754
      %v756 = vpop.f32.mrf.mxu0
      %v757 = vpop.f32.mrf.mxu0
      %v758 = vadd.f32 0.0, %v757
      %v759 = vpop.f32.mrf.mxu0
      %760 = vmatprep.mubr.bf16.mxu0 %v607
      %761 = vmatmul.mubr.bf16.gmra.mxu0 %v606
      %v762 = vpop.f32.mrf.mxu0
      %v763 = vadd.f32 0.0, %v762
      %v764 = vpop.f32.mrf.mxu0
      %v765 = vpop.f32.mrf.mxu0
      %v766 = vadd.f32 0.0, %v765
      %v767 = vpop.f32.mrf.mxu0
      %768 = vmatprep.mubr.bf16.mxu0 %v609
      %769 = vmatmul.mubr.bf16.gmra.mxu0 %v608
      %v770 = vpop.f32.mrf.mxu0
      %v771 = vadd.f32 0.0, %v770
      %v772 = vpop.f32.mrf.mxu0
      %v773 = vpop.f32.mrf.mxu0
      %v774 = vadd.f32 0.0, %v773
      %v775 = vpop.f32.mrf.mxu0
      %776 = vmatprep.mubr.bf16.mxu0 %v611
      %777 = vmatmul.mubr.bf16.gmra.mxu0 %v610
      %v778 = vpop.f32.mrf.mxu0
      %v779 = vadd.f32 0.0, %v778
      %v780 = vpop.f32.mrf.mxu0
      %v781 = vpop.f32.mrf.mxu0
      %v782 = vadd.f32 0.0, %v781
      %v783 = vpop.f32.mrf.mxu0
      %784 = vmatprep.mubr.bf16.mxu0 %v613
      %785 = vmatmul.mubr.bf16.gmra.mxu0 %v612
      %v786 = vpop.f32.mrf.mxu0
      %v787 = vadd.f32 0.0, %v786
      %v788 = vpop.f32.mrf.mxu0
      %v789 = vpop.f32.mrf.mxu0
      %v790 = vpop.f32.mrf.mxu0
      %791 = vdwg.mxu0
      %v792 = vadd.f32 %v755, %v758
      %v793 = vadd.f32 %v792, %v763
      %v794 = vadd.f32 %v793, %v766
      %v795 = vadd.f32 %v794, %v771
      %v796 = vadd.f32 %v795, %v774
      %v797 = vadd.f32 %v796, %v779
      %v798 = vadd.f32 %v797, %v782
      %v799 = vadd.f32 %v798, %v787
      %v800 = vrot.slane %v799, 4
      %v801 = vadd.f32 %v799, %v800
      %v802 = vrot.slane %v801, 2
      %v803 = vadd.f32 %v801, %v802
      %v804 = vrot.slane %v803, 1
      %v805 = vadd.f32 %v803, %v804
      %v806 = vrcp.pop 72.0
      %v807 = vmul.f32 %v805, %v806
      %v808 = vsub.f32 %v755, %v807
      %v809 = vsub.f32 %v758, %v807
      %v810 = vsub.f32 %v763, %v807
      %v811 = vsub.f32 %v766, %v807
      %v812 = vsub.f32 %v771, %v807
      %v813 = vsub.f32 %v774, %v807
      %v814 = vsub.f32 %v779, %v807
      %v815 = vsub.f32 %v782, %v807
      %v816 = vsub.f32 %v787, %v807
      %v817 = vmul.f32 %v808, %v808
      %v818 = vmul.f32 %v809, %v809
      %v819 = vmul.f32 %v810, %v810
      %v820 = vmul.f32 %v811, %v811
      %v821 = vmul.f32 %v812, %v812
      %v822 = vmul.f32 %v813, %v813
      %v823 = vmul.f32 %v814, %v814
      %v824 = vmul.f32 %v815, %v815
      %v825 = vmul.f32 %v816, %v816
      %v826 = vadd.f32 %v817, %v818
      %v827 = vadd.f32 %v826, %v819
      %v828 = vadd.f32 %v827, %v820
      %v829 = vadd.f32 %v828, %v821
      %v830 = vadd.f32 %v829, %v822
      %v831 = vadd.f32 %v830, %v823
      %v832 = vadd.f32 %v831, %v824
      %v833 = vadd.f32 %v832, %v825
      %v834 = vrot.slane %v833, 4
      %v835 = vadd.f32 %v833, %v834
      %v836 = vrot.slane %v835, 2
      %v837 = vadd.f32 %v835, %v836
      %v838 = vrot.slane %v837, 1
      %v839 = vadd.f32 %v837, %v838
      %v840 = vmul.f32 %v839, %v806
      %v841 = vadd.f32 %v840, 1e-05
      %v842 = vrsqrt.pop %v841
      %v843 = vmul.f32 %v808, %v842
      %v844 = vmul.f32 %v809, %v842
      %v845 = vmul.f32 %v810, %v842
      %v846 = vmul.f32 %v811, %v842
      %v847 = vmul.f32 %v812, %v842
      %v848 = vmul.f32 %v813, %v842
      %v849 = vmul.f32 %v814, %v842
      %v850 = vmul.f32 %v815, %v842
      %v851 = vmul.f32 %v816, %v842
      %v852 = vld [vmem:[%s2] sm:$0x1]
      %v854 = vlaneseq
      %v855 = vshrl.u32 %v854, 7
      %v856 = vsub.s32 0, %v855
      %v857 = vrot.slane %v852, %v856
      %v859 = vmul.f32 %v843, %v857
      %v860 = vmul.f32 %v844, %v857
      %v861 = vmul.f32 %v845, %v857
      %v862 = vmul.f32 %v846, %v857
      %v863 = vmul.f32 %v847, %v857
      %v864 = vmul.f32 %v848, %v857
      %v865 = vmul.f32 %v849, %v857
      %v866 = vmul.f32 %v850, %v857
      %v867 = vmul.f32 %v851, %v857
      %v868 = vld [vmem:[%s3] sm:$0x1]
      %v870 = vlaneseq
      %v871 = vshrl.u32 %v870, 7
      %v872 = vsub.s32 0, %v871
      %v873 = vrot.slane %v868, %v872
      %v875 = vadd.f32 %v859, %v873
      %v876 = vadd.f32 %v860, %v873
      %v877 = vadd.f32 %v861, %v873
      %v878 = vadd.f32 %v862, %v873
      %v879 = vadd.f32 %v863, %v873
      %v880 = vadd.f32 %v864, %v873
      %v881 = vadd.f32 %v865, %v873
      %v882 = vadd.f32 %v866, %v873
      %v883 = vadd.f32 %v867, %v873
      %v884 = vmax.f32 %v875, 0.0
      %v885 = vmax.f32 %v876, 0.0
      %v886 = vmax.f32 %v877, 0.0
      %v887 = vmax.f32 %v878, 0.0
      %v888 = vmax.f32 %v879, 0.0
      %v889 = vmax.f32 %v880, 0.0
      %v890 = vmax.f32 %v881, 0.0
      %v891 = vmax.f32 %v882, 0.0
      %v892 = vmax.f32 %v883, 0.0
      %v893 = vpack.c.bf16 %v885, %v884
      %v894 = vpack.c.bf16 %v887, %v886
      %v895 = vpack.c.bf16 %v889, %v888
      %v896 = vpack.c.bf16 %v891, %v890
      %v897 = vpack.c.bf16 %v892, %v892
      %v898 = vld [vmem:[%s4] sm:$0xf]
      %v899 = vld [vmem:[%s4 + $0x4] sm:$0xf]
      %v900 = vld [vmem:[%s4 + $0x8] sm:$0xf]
      %v901 = vld [vmem:[%s4 + $0xc] sm:$0xf]
      %v902 = vld [vmem:[%s4 + $0x10] sm:$0xf]
      %v903 = vld [vmem:[%s4 + $0x14] sm:$0xf]
      %v904 = vld [vmem:[%s4 + $0x18] sm:$0xf]
      %v905 = vld [vmem:[%s4 + $0x1c] sm:$0xf]
      %v906 = vld [vmem:[%s4 + $0x20] sm:$0xf]
      %v907 = vld [vmem:[%s4 + $0x24] sm:$0xf]
      %v908 = vld [vmem:[%s4 + $0x28] sm:$0xf]
      %v909 = vld [vmem:[%s4 + $0x2c] sm:$0xf]
      %v910 = vld [vmem:[%s4 + $0x30] sm:$0xf]
      %v911 = vld [vmem:[%s4 + $0x34] sm:$0xf]
      %v912 = vld [vmem:[%s4 + $0x38] sm:$0xf]
      %v913 = vld [vmem:[%s4 + $0x3c] sm:$0xf]
      %v930 = vunpack.c.l.b16 %v898
      %v931 = vunpack.c.l.b16 %v899
      %v932 = vunpack.c.l.b16 %v900
      %v933 = vunpack.c.l.b16 %v901
      %v934 = vunpack.c.l.b16 %v902
      %v935 = vunpack.c.l.b16 %v903
      %v936 = vunpack.c.l.b16 %v904
      %v937 = vunpack.c.l.b16 %v905
      %v938 = vunpack.c.l.b16 %v906
      %v939 = vunpack.c.l.b16 %v907
      %v940 = vunpack.c.l.b16 %v908
      %v941 = vunpack.c.l.b16 %v909
      %v942 = vunpack.c.l.b16 %v910
      %v943 = vunpack.c.l.b16 %v911
      %v944 = vunpack.c.l.b16 %v912
      %v945 = vunpack.c.l.b16 %v913
      %v946 = vpack.c.b16 %v931, %v930
      %v947 = vpack.c.b16 %v933, %v932
      %v948 = vpack.c.b16 %v935, %v934
      %v949 = vpack.c.b16 %v937, %v936
      %v950 = vpack.c.b16 %v939, %v938
      %v951 = vpack.c.b16 %v941, %v940
      %v952 = vpack.c.b16 %v943, %v942
      %v953 = vpack.c.b16 %v945, %v944
      %962 = vmatprep.subr.bf16.mxu0 0
      %963 = vmatpush1.bf16.msra.mxu0 %v953
      %964 = vmatprep.subr.bf16.mxu0 0
      %965 = vmatpush1.bf16.msra.mxu0 %v952
      %966 = vmatprep.subr.bf16.mxu0 0
      %967 = vmatpush1.bf16.msra.mxu0 %v951
      %968 = vmatprep.subr.bf16.mxu0 0
      %969 = vmatpush1.bf16.msra.mxu0 %v950
      %970 = vmatprep.subr.bf16.mxu0 0
      %971 = vmatpush1.bf16.msra.mxu0 %v949
      %972 = vmatprep.subr.bf16.mxu0 0
      %973 = vmatpush1.bf16.msra.mxu0 %v948
      %974 = vmatprep.subr.bf16.mxu0 0
      %975 = vmatpush1.bf16.msra.mxu0 %v947
      %976 = vmatprep.subr.bf16.mxu0 0
      %977 = vmatpush1.bf16.msra.mxu0 %v946
      %978 = vmatprep.subr.bf16.mxu0 0
      %979 = vmatpush2.bf16.msra.mxu0 0
      %980 = vmatprep.subr.bf16.mxu0 0
      %981 = vmatpush2.bf16.msra.mxu0 0
      %982 = vmatprep.subr.bf16.mxu0 0
      %983 = vmatpush2.bf16.msra.mxu0 0
      %984 = vmatprep.subr.bf16.mxu0 0
      %985 = vmatpush2.bf16.msra.mxu0 0
      %986 = vmatprep.subr.bf16.mxu0 0
      %987 = vmatpush2.bf16.msra.mxu0 0
      %988 = vmatprep.subr.bf16.mxu0 0
      %989 = vmatpush2.bf16.msra.mxu0 0
      %990 = vmatprep.subr.bf16.mxu0 0
      %991 = vmatpush2.bf16.msra.mxu0 0
      %992 = vmatprep.subr.bf16.mxu0 0
      %993 = vmatpush2.bf16.msra.mxu0 0
      %994 = vmatprep.mubr.bf16.mxu0 0
      %995 = vmatmul.mubr.bf16.gmra.mxu0 %v893
      %v996 = vpop.f32.mrf.mxu0
      %v997 = vadd.f32 0.0, %v996
      %v998 = vpop.f32.mrf.mxu0
      %v999 = vpop.f32.mrf.mxu0
      %v1000 = vadd.f32 0.0, %v999
      %v1001 = vpop.f32.mrf.mxu0
      %1002 = vmatprep.mubr.bf16.mxu0 0
      %1003 = vmatmul.mubr.bf16.gmra.mxu0 %v894
      %v1004 = vpop.f32.mrf.mxu0
      %v1005 = vadd.f32 0.0, %v1004
      %v1006 = vpop.f32.mrf.mxu0
      %v1007 = vpop.f32.mrf.mxu0
      %v1008 = vadd.f32 0.0, %v1007
      %v1009 = vpop.f32.mrf.mxu0
      %1010 = vmatprep.mubr.bf16.mxu0 0
      %1011 = vmatmul.mubr.bf16.gmra.mxu0 %v895
      %v1012 = vpop.f32.mrf.mxu0
      %v1013 = vadd.f32 0.0, %v1012
      %v1014 = vpop.f32.mrf.mxu0
      %v1015 = vpop.f32.mrf.mxu0
      %v1016 = vadd.f32 0.0, %v1015
      %v1017 = vpop.f32.mrf.mxu0
      %1018 = vmatprep.mubr.bf16.mxu0 0
      %1019 = vmatmul.mubr.bf16.gmra.mxu0 %v896
      %v1020 = vpop.f32.mrf.mxu0
      %v1021 = vadd.f32 0.0, %v1020
      %v1022 = vpop.f32.mrf.mxu0
      %v1023 = vpop.f32.mrf.mxu0
      %v1024 = vadd.f32 0.0, %v1023
      %v1025 = vpop.f32.mrf.mxu0
      %1026 = vmatprep.mubr.bf16.mxu0 0
      %1027 = vmatmul.mubr.bf16.gmra.mxu0 %v897
      %v1028 = vpop.f32.mrf.mxu0
      %v1029 = vadd.f32 0.0, %v1028
      %v1030 = vpop.f32.mrf.mxu0
      %v1031 = vpop.f32.mrf.mxu0
      %v1032 = vpop.f32.mrf.mxu0
      %1033 = vdwg.mxu0
      %v1034 = vadd.f32 %v997, %v1000
      %v1035 = vadd.f32 %v1034, %v1005
      %v1036 = vadd.f32 %v1035, %v1008
      %v1037 = vadd.f32 %v1036, %v1013
      %v1038 = vadd.f32 %v1037, %v1016
      %v1039 = vadd.f32 %v1038, %v1021
      %v1040 = vadd.f32 %v1039, %v1024
      %v1041 = vadd.f32 %v1040, %v1029
      %v1042 = vrot.slane %v1041, 4
      %v1043 = vadd.f32 %v1041, %v1042
      %v1044 = vrot.slane %v1043, 2
      %v1045 = vadd.f32 %v1043, %v1044
      %v1046 = vrot.slane %v1045, 1
      %v1047 = vadd.f32 %v1045, %v1046
      %v1048 = vmul.f32 %v1047, %v806
      %v1049 = vsub.f32 %v997, %v1048
      %v1050 = vsub.f32 %v1000, %v1048
      %v1051 = vsub.f32 %v1005, %v1048
      %v1052 = vsub.f32 %v1008, %v1048
      %v1053 = vsub.f32 %v1013, %v1048
      %v1054 = vsub.f32 %v1016, %v1048
      %v1055 = vsub.f32 %v1021, %v1048
      %v1056 = vsub.f32 %v1024, %v1048
      %v1057 = vsub.f32 %v1029, %v1048
      %v1058 = vmul.f32 %v1049, %v1049
      %v1059 = vmul.f32 %v1050, %v1050
      %v1060 = vmul.f32 %v1051, %v1051
      %v1061 = vmul.f32 %v1052, %v1052
      %v1062 = vmul.f32 %v1053, %v1053
      %v1063 = vmul.f32 %v1054, %v1054
      %v1064 = vmul.f32 %v1055, %v1055
      %v1065 = vmul.f32 %v1056, %v1056
      %v1066 = vmul.f32 %v1057, %v1057
      %v1067 = vadd.f32 %v1058, %v1059
      %v1068 = vadd.f32 %v1067, %v1060
      %v1069 = vadd.f32 %v1068, %v1061
      %v1070 = vadd.f32 %v1069, %v1062
      %v1071 = vadd.f32 %v1070, %v1063
      %v1072 = vadd.f32 %v1071, %v1064
      %v1073 = vadd.f32 %v1072, %v1065
      %v1074 = vadd.f32 %v1073, %v1066
      %v1075 = vrot.slane %v1074, 4
      %v1076 = vadd.f32 %v1074, %v1075
      %v1077 = vrot.slane %v1076, 2
      %v1078 = vadd.f32 %v1076, %v1077
      %v1079 = vrot.slane %v1078, 1
      %v1080 = vadd.f32 %v1078, %v1079
      %v1081 = vmul.f32 %v1080, %v806
      %v1082 = vadd.f32 %v1081, 1e-05
      %v1083 = vrsqrt.pop %v1082
      %v1084 = vmul.f32 %v1049, %v1083
      %v1085 = vmul.f32 %v1050, %v1083
      %v1086 = vmul.f32 %v1051, %v1083
      %v1087 = vmul.f32 %v1052, %v1083
      %v1088 = vmul.f32 %v1053, %v1083
      %v1089 = vmul.f32 %v1054, %v1083
      %v1090 = vmul.f32 %v1055, %v1083
      %v1091 = vmul.f32 %v1056, %v1083
      %v1092 = vmul.f32 %v1057, %v1083
      %v1093 = vld [vmem:[%s5] sm:$0x1]
      %v1095 = vlaneseq
      %v1096 = vshrl.u32 %v1095, 7
      %v1097 = vsub.s32 0, %v1096
      %v1098 = vrot.slane %v1093, %v1097
      %v1100 = vmul.f32 %v1084, %v1098
      %v1101 = vmul.f32 %v1085, %v1098
      %v1102 = vmul.f32 %v1086, %v1098
      %v1103 = vmul.f32 %v1087, %v1098
      %v1104 = vmul.f32 %v1088, %v1098
      %v1105 = vmul.f32 %v1089, %v1098
      %v1106 = vmul.f32 %v1090, %v1098
      %v1107 = vmul.f32 %v1091, %v1098
      %v1108 = vmul.f32 %v1092, %v1098
      %v1109 = vld [vmem:[%s6] sm:$0x1]
      %v1111 = vlaneseq
      %v1112 = vshrl.u32 %v1111, 7
      %v1113 = vsub.s32 0, %v1112
      %v1114 = vrot.slane %v1109, %v1113
      %v1116 = vadd.f32 %v1100, %v1114
      %v1117 = vadd.f32 %v1101, %v1114
      %v1118 = vadd.f32 %v1102, %v1114
      %v1119 = vadd.f32 %v1103, %v1114
      %v1120 = vadd.f32 %v1104, %v1114
      %v1121 = vadd.f32 %v1105, %v1114
      %v1122 = vadd.f32 %v1106, %v1114
      %v1123 = vadd.f32 %v1107, %v1114
      %v1124 = vadd.f32 %v1108, %v1114
      %v1125 = vmax.f32 %v1116, 0.0
      %v1126 = vmax.f32 %v1117, 0.0
      %v1127 = vmax.f32 %v1118, 0.0
      %v1128 = vmax.f32 %v1119, 0.0
      %v1129 = vmax.f32 %v1120, 0.0
      %v1130 = vmax.f32 %v1121, 0.0
      %v1131 = vmax.f32 %v1122, 0.0
      %v1132 = vmax.f32 %v1123, 0.0
      %v1133 = vmax.f32 %v1124, 0.0
      %v1134 = vpack.c.bf16 %v1126, %v1125
      %v1135 = vpack.c.bf16 %v1128, %v1127
      %v1136 = vpack.c.bf16 %v1130, %v1129
      %v1137 = vpack.c.bf16 %v1132, %v1131
      %v1138 = vpack.c.bf16 %v1133, %v1133
      %v1139 = vld [vmem:[%s7] sm:$0xff]
      %v1140 = vld [vmem:[%s7 + $0x8] sm:$0xff]
      %v1141 = vld [vmem:[%s7 + $0x10] sm:$0xff]
      %v1142 = vld [vmem:[%s7 + $0x18] sm:$0xff]
      %v1143 = vld [vmem:[%s7 + $0x20] sm:$0xff]
      %v1144 = vld [vmem:[%s7 + $0x28] sm:$0xff]
      %v1145 = vld [vmem:[%s7 + $0x30] sm:$0xff]
      %v1146 = vld [vmem:[%s7 + $0x38] sm:$0xff]
      %v1147 = vld [vmem:[%s7 + $0x40] sm:$0xff]
      %v1148 = vld [vmem:[%s7 + $0x48] sm:$0xff]
      %v1149 = vld [vmem:[%s7 + $0x50] sm:$0xff]
      %v1150 = vld [vmem:[%s7 + $0x58] sm:$0xff]
      %v1151 = vld [vmem:[%s7 + $0x60] sm:$0xff]
      %v1152 = vld [vmem:[%s7 + $0x68] sm:$0xff]
      %v1153 = vld [vmem:[%s7 + $0x70] sm:$0xff]
      %v1154 = vld [vmem:[%s7 + $0x78] sm:$0xff]
      %v1171 = vunpack.c.l.b16 %v1139
      %v1172 = vunpack.c.h.b16 %v1139
      %v1173 = vunpack.c.l.b16 %v1140
      %v1174 = vunpack.c.h.b16 %v1140
      %v1175 = vunpack.c.l.b16 %v1141
      %v1176 = vunpack.c.h.b16 %v1141
      %v1177 = vunpack.c.l.b16 %v1142
      %v1178 = vunpack.c.h.b16 %v1142
      %v1179 = vunpack.c.l.b16 %v1143
      %v1180 = vunpack.c.h.b16 %v1143
      %v1181 = vunpack.c.l.b16 %v1144
      %v1182 = vunpack.c.h.b16 %v1144
      %v1183 = vunpack.c.l.b16 %v1145
      %v1184 = vunpack.c.h.b16 %v1145
      %v1185 = vunpack.c.l.b16 %v1146
      %v1186 = vunpack.c.h.b16 %v1146
      %v1187 = vunpack.c.l.b16 %v1147
      %v1188 = vunpack.c.h.b16 %v1147
      %v1189 = vunpack.c.l.b16 %v1148
      %v1190 = vunpack.c.h.b16 %v1148
      %v1191 = vunpack.c.l.b16 %v1149
      %v1192 = vunpack.c.h.b16 %v1149
      %v1193 = vunpack.c.l.b16 %v1150
      %v1194 = vunpack.c.h.b16 %v1150
      %v1195 = vunpack.c.l.b16 %v1151
      %v1196 = vunpack.c.h.b16 %v1151
      %v1197 = vunpack.c.l.b16 %v1152
      %v1198 = vunpack.c.h.b16 %v1152
      %v1199 = vunpack.c.l.b16 %v1153
      %v1200 = vunpack.c.h.b16 %v1153
      %v1201 = vunpack.c.l.b16 %v1154
      %v1202 = vunpack.c.h.b16 %v1154
      %v1203 = vpack.c.b16 %v1173, %v1171
      %v1204 = vpack.c.b16 %v1174, %v1172
      %v1205 = vpack.c.b16 %v1177, %v1175
      %v1206 = vpack.c.b16 %v1178, %v1176
      %v1207 = vpack.c.b16 %v1181, %v1179
      %v1208 = vpack.c.b16 %v1182, %v1180
      %v1209 = vpack.c.b16 %v1185, %v1183
      %v1210 = vpack.c.b16 %v1186, %v1184
      %v1211 = vpack.c.b16 %v1189, %v1187
      %v1212 = vpack.c.b16 %v1190, %v1188
      %v1213 = vpack.c.b16 %v1193, %v1191
      %v1214 = vpack.c.b16 %v1194, %v1192
      %v1215 = vpack.c.b16 %v1197, %v1195
      %v1216 = vpack.c.b16 %v1198, %v1196
      %v1217 = vpack.c.b16 %v1201, %v1199
      %v1218 = vpack.c.b16 %v1202, %v1200
      %1235 = vmatprep.subr.bf16.mxu0 %v1218
      %1236 = vmatpush1.bf16.msra.mxu0 %v1217
      %1237 = vmatprep.subr.bf16.mxu0 %v1216
      %1238 = vmatpush1.bf16.msra.mxu0 %v1215
      %1239 = vmatprep.subr.bf16.mxu0 %v1214
      %1240 = vmatpush1.bf16.msra.mxu0 %v1213
      %1241 = vmatprep.subr.bf16.mxu0 %v1212
      %1242 = vmatpush1.bf16.msra.mxu0 %v1211
      %1243 = vmatprep.subr.bf16.mxu0 %v1210
      %1244 = vmatpush1.bf16.msra.mxu0 %v1209
      %1245 = vmatprep.subr.bf16.mxu0 %v1208
      %1246 = vmatpush1.bf16.msra.mxu0 %v1207
      %1247 = vmatprep.subr.bf16.mxu0 %v1206
      %1248 = vmatpush1.bf16.msra.mxu0 %v1205
      %1249 = vmatprep.subr.bf16.mxu0 %v1204
      %1250 = vmatpush1.bf16.msra.mxu0 %v1203
      %1251 = vmatprep.subr.bf16.mxu0 0
      %1252 = vmatpush2.bf16.msra.mxu0 0
      %1253 = vmatprep.subr.bf16.mxu0 0
      %1254 = vmatpush2.bf16.msra.mxu0 0
      %1255 = vmatprep.subr.bf16.mxu0 0
      %1256 = vmatpush2.bf16.msra.mxu0 0
      %1257 = vmatprep.subr.bf16.mxu0 0
      %1258 = vmatpush2.bf16.msra.mxu0 0
      %1259 = vmatprep.subr.bf16.mxu0 0
      %1260 = vmatpush2.bf16.msra.mxu0 0
      %1261 = vmatprep.subr.bf16.mxu0 0
      %1262 = vmatpush2.bf16.msra.mxu0 0
      %1263 = vmatprep.subr.bf16.mxu0 0
      %1264 = vmatpush2.bf16.msra.mxu0 0
      %1265 = vmatprep.subr.bf16.mxu0 0
      %1266 = vmatpush2.bf16.msra.mxu0 0
      %1267 = vmatprep.mubr.bf16.mxu0 0
      %1268 = vmatmul.mubr.bf16.gmra.mxu0 %v1134
      %v1269 = vpop.f32.mrf.mxu0
      %v1270 = vadd.f32 0.0, %v1269
      %v1271 = vpop.f32.mrf.mxu0
      %v1272 = vadd.f32 0.0, %v1271
      %v1273 = vpop.f32.mrf.mxu0
      %v1274 = vadd.f32 0.0, %v1273
      %v1275 = vpop.f32.mrf.mxu0
      %v1276 = vadd.f32 0.0, %v1275
      %1277 = vmatprep.mubr.bf16.mxu0 0
      %1278 = vmatmul.mubr.bf16.gmra.mxu0 %v1135
      %v1279 = vpop.f32.mrf.mxu0
      %v1280 = vadd.f32 0.0, %v1279
      %v1281 = vpop.f32.mrf.mxu0
      %v1282 = vadd.f32 0.0, %v1281
      %v1283 = vpop.f32.mrf.mxu0
      %v1284 = vadd.f32 0.0, %v1283
      %v1285 = vpop.f32.mrf.mxu0
      %v1286 = vadd.f32 0.0, %v1285
      %1287 = vmatprep.mubr.bf16.mxu0 0
      %1288 = vmatmul.mubr.bf16.gmra.mxu0 %v1136
      %v1289 = vpop.f32.mrf.mxu0
      %v1290 = vadd.f32 0.0, %v1289
      %v1291 = vpop.f32.mrf.mxu0
      %v1292 = vadd.f32 0.0, %v1291
      %v1293 = vpop.f32.mrf.mxu0
      %v1294 = vadd.f32 0.0, %v1293
      %v1295 = vpop.f32.mrf.mxu0
      %v1296 = vadd.f32 0.0, %v1295
      %1297 = vmatprep.mubr.bf16.mxu0 0
      %1298 = vmatmul.mubr.bf16.gmra.mxu0 %v1137
      %v1299 = vpop.f32.mrf.mxu0
      %v1300 = vadd.f32 0.0, %v1299
      %v1301 = vpop.f32.mrf.mxu0
      %v1302 = vadd.f32 0.0, %v1301
      %v1303 = vpop.f32.mrf.mxu0
      %v1304 = vadd.f32 0.0, %v1303
      %v1305 = vpop.f32.mrf.mxu0
      %v1306 = vadd.f32 0.0, %v1305
      %1307 = vmatprep.mubr.bf16.mxu0 0
      %1308 = vmatmul.mubr.bf16.gmra.mxu0 %v1138
      %v1309 = vpop.f32.mrf.mxu0
      %v1310 = vadd.f32 0.0, %v1309
      %v1311 = vpop.f32.mrf.mxu0
      %v1312 = vadd.f32 0.0, %v1311
      %v1313 = vpop.f32.mrf.mxu0
      %v1314 = vpop.f32.mrf.mxu0
      %1315 = vdwg.mxu0
      %v1316 = vadd.f32 %v1270, %v1274
      %v1317 = vadd.f32 %v1316, %v1280
      %v1318 = vadd.f32 %v1317, %v1284
      %v1319 = vadd.f32 %v1318, %v1290
      %v1320 = vadd.f32 %v1319, %v1294
      %v1321 = vadd.f32 %v1320, %v1300
      %v1322 = vadd.f32 %v1321, %v1304
      %v1323 = vadd.f32 %v1322, %v1310
      %v1324 = vrot.slane %v1323, 4
      %v1325 = vadd.f32 %v1323, %v1324
      %v1326 = vrot.slane %v1325, 2
      %v1327 = vadd.f32 %v1325, %v1326
      %v1328 = vrot.slane %v1327, 1
      %v1329 = vadd.f32 %v1327, %v1328
      %v1330 = vadd.f32 %v1272, %v1276
      %v1331 = vadd.f32 %v1330, %v1282
      %v1332 = vadd.f32 %v1331, %v1286
      %v1333 = vadd.f32 %v1332, %v1292
      %v1334 = vadd.f32 %v1333, %v1296
      %v1335 = vadd.f32 %v1334, %v1302
      %v1336 = vadd.f32 %v1335, %v1306
      %v1337 = vadd.f32 %v1336, %v1312
      %v1338 = vrot.slane %v1337, 4
      %v1339 = vadd.f32 %v1337, %v1338
      %v1340 = vrot.slane %v1339, 2
      %v1341 = vadd.f32 %v1339, %v1340
      %v1342 = vrot.slane %v1341, 1
      %v1343 = vadd.f32 %v1341, %v1342
      %v1344 = vmul.f32 %v1329, %v806
      %v1345 = vmul.f32 %v1343, %v806
      %v1346 = vsub.f32 %v1270, %v1344
      %v1347 = vsub.f32 %v1272, %v1345
      %v1348 = vsub.f32 %v1274, %v1344
      %v1349 = vsub.f32 %v1276, %v1345
      %v1350 = vsub.f32 %v1280, %v1344
      %v1351 = vsub.f32 %v1282, %v1345
      %v1352 = vsub.f32 %v1284, %v1344
      %v1353 = vsub.f32 %v1286, %v1345
      %v1354 = vsub.f32 %v1290, %v1344
      %v1355 = vsub.f32 %v1292, %v1345
      %v1356 = vsub.f32 %v1294, %v1344
      %v1357 = vsub.f32 %v1296, %v1345
      %v1358 = vsub.f32 %v1300, %v1344
      %v1359 = vsub.f32 %v1302, %v1345
      %v1360 = vsub.f32 %v1304, %v1344
      %v1361 = vsub.f32 %v1306, %v1345
      %v1362 = vsub.f32 %v1310, %v1344
      %v1363 = vsub.f32 %v1312, %v1345
      %v1364 = vmul.f32 %v1346, %v1346
      %v1365 = vmul.f32 %v1347, %v1347
      %v1366 = vmul.f32 %v1348, %v1348
      %v1367 = vmul.f32 %v1349, %v1349
      %v1368 = vmul.f32 %v1350, %v1350
      %v1369 = vmul.f32 %v1351, %v1351
      %v1370 = vmul.f32 %v1352, %v1352
      %v1371 = vmul.f32 %v1353, %v1353
      %v1372 = vmul.f32 %v1354, %v1354
      %v1373 = vmul.f32 %v1355, %v1355
      %v1374 = vmul.f32 %v1356, %v1356
      %v1375 = vmul.f32 %v1357, %v1357
      %v1376 = vmul.f32 %v1358, %v1358
      %v1377 = vmul.f32 %v1359, %v1359
      %v1378 = vmul.f32 %v1360, %v1360
      %v1379 = vmul.f32 %v1361, %v1361
      %v1380 = vmul.f32 %v1362, %v1362
      %v1381 = vmul.f32 %v1363, %v1363
      %v1382 = vadd.f32 %v1364, %v1366
      %v1383 = vadd.f32 %v1382, %v1368
      %v1384 = vadd.f32 %v1383, %v1370
      %v1385 = vadd.f32 %v1384, %v1372
      %v1386 = vadd.f32 %v1385, %v1374
      %v1387 = vadd.f32 %v1386, %v1376
      %v1388 = vadd.f32 %v1387, %v1378
      %v1389 = vadd.f32 %v1388, %v1380
      %v1390 = vrot.slane %v1389, 4
      %v1391 = vadd.f32 %v1389, %v1390
      %v1392 = vrot.slane %v1391, 2
      %v1393 = vadd.f32 %v1391, %v1392
      %v1394 = vrot.slane %v1393, 1
      %v1395 = vadd.f32 %v1393, %v1394
      %v1396 = vadd.f32 %v1365, %v1367
      %v1397 = vadd.f32 %v1396, %v1369
      %v1398 = vadd.f32 %v1397, %v1371
      %v1399 = vadd.f32 %v1398, %v1373
      %v1400 = vadd.f32 %v1399, %v1375
      %v1401 = vadd.f32 %v1400, %v1377
      %v1402 = vadd.f32 %v1401, %v1379
      %v1403 = vadd.f32 %v1402, %v1381
      %v1404 = vrot.slane %v1403, 4
      %v1405 = vadd.f32 %v1403, %v1404
      %v1406 = vrot.slane %v1405, 2
      %v1407 = vadd.f32 %v1405, %v1406
      %v1408 = vrot.slane %v1407, 1
      %v1409 = vadd.f32 %v1407, %v1408
      %v1410 = vmul.f32 %v1395, %v806
      %v1411 = vmul.f32 %v1409, %v806
      %v1412 = vadd.f32 %v1410, 1e-05
      %v1413 = vadd.f32 %v1411, 1e-05
      %v1414 = vrsqrt.pop %v1412
      %v1415 = vrsqrt.pop %v1413
      %v1416 = vmul.f32 %v1346, %v1414
      %v1417 = vmul.f32 %v1347, %v1415
      %v1418 = vmul.f32 %v1348, %v1414
      %v1419 = vmul.f32 %v1349, %v1415
      %v1420 = vmul.f32 %v1350, %v1414
      %v1421 = vmul.f32 %v1351, %v1415
      %v1422 = vmul.f32 %v1352, %v1414
      %v1423 = vmul.f32 %v1353, %v1415
      %v1424 = vmul.f32 %v1354, %v1414
      %v1425 = vmul.f32 %v1355, %v1415
      %v1426 = vmul.f32 %v1356, %v1414
      %v1427 = vmul.f32 %v1357, %v1415
      %v1428 = vmul.f32 %v1358, %v1414
      %v1429 = vmul.f32 %v1359, %v1415
      %v1430 = vmul.f32 %v1360, %v1414
      %v1431 = vmul.f32 %v1361, %v1415
      %v1432 = vmul.f32 %v1362, %v1414
      %v1433 = vmul.f32 %v1363, %v1415
      %v1434 = vld [vmem:[%s8] sm:$0x3]
      %v1436 = vlaneseq
      %v1437 = vshrl.u32 %v1436, 7
      %v1438 = vsub.s32 0, %v1437
      %v1439 = vrot.slane %v1434, %v1438
      %v1440 = vlaneseq
      %v1441 = vshrl.u32 %v1440, 7
      %v1442 = vsub.s32 1, %v1441
      %v1443 = vrot.slane %v1434, %v1442
      %v1446 = vmul.f32 %v1416, %v1439
      %v1447 = vmul.f32 %v1417, %v1443
      %v1448 = vmul.f32 %v1418, %v1439
      %v1449 = vmul.f32 %v1419, %v1443
      %v1450 = vmul.f32 %v1420, %v1439
      %v1451 = vmul.f32 %v1421, %v1443
      %v1452 = vmul.f32 %v1422, %v1439
      %v1453 = vmul.f32 %v1423, %v1443
      %v1454 = vmul.f32 %v1424, %v1439
      %v1455 = vmul.f32 %v1425, %v1443
      %v1456 = vmul.f32 %v1426, %v1439
      %v1457 = vmul.f32 %v1427, %v1443
      %v1458 = vmul.f32 %v1428, %v1439
      %v1459 = vmul.f32 %v1429, %v1443
      %v1460 = vmul.f32 %v1430, %v1439
      %v1461 = vmul.f32 %v1431, %v1443
      %v1462 = vmul.f32 %v1432, %v1439
      %v1463 = vmul.f32 %v1433, %v1443
      %v1464 = vld [vmem:[%s9] sm:$0x3]
      %v1466 = vlaneseq
      %v1467 = vshrl.u32 %v1466, 7
      %v1468 = vsub.s32 0, %v1467
      %v1469 = vrot.slane %v1464, %v1468
      %v1470 = vlaneseq
      %v1471 = vshrl.u32 %v1470, 7
      %v1472 = vsub.s32 1, %v1471
      %v1473 = vrot.slane %v1464, %v1472
      %v1476 = vadd.f32 %v1446, %v1469
      %v1477 = vadd.f32 %v1447, %v1473
      %v1478 = vadd.f32 %v1448, %v1469
      %v1479 = vadd.f32 %v1449, %v1473
      %v1480 = vadd.f32 %v1450, %v1469
      %v1481 = vadd.f32 %v1451, %v1473
      %v1482 = vadd.f32 %v1452, %v1469
      %v1483 = vadd.f32 %v1453, %v1473
      %v1484 = vadd.f32 %v1454, %v1469
      %v1485 = vadd.f32 %v1455, %v1473
      %v1486 = vadd.f32 %v1456, %v1469
      %v1487 = vadd.f32 %v1457, %v1473
      %v1488 = vadd.f32 %v1458, %v1469
      %v1489 = vadd.f32 %v1459, %v1473
      %v1490 = vadd.f32 %v1460, %v1469
      %v1491 = vadd.f32 %v1461, %v1473
      %v1492 = vadd.f32 %v1462, %v1469
      %v1493 = vadd.f32 %v1463, %v1473
      %1494 = vst [vmem:[%s529] sm:$0xff] %v1476
      %1495 = vst [vmem:[%s529 + $0x8] sm:$0xff] %v1477
      %1496 = vst [vmem:[%s529 + $0x10] sm:$0xff] %v1478
      %1497 = vst [vmem:[%s529 + $0x18] sm:$0xff] %v1479
      %1498 = vst [vmem:[%s529 + $0x20] sm:$0xff] %v1480
      %1499 = vst [vmem:[%s529 + $0x28] sm:$0xff] %v1481
      %1500 = vst [vmem:[%s529 + $0x30] sm:$0xff] %v1482
      %1501 = vst [vmem:[%s529 + $0x38] sm:$0xff] %v1483
      %1502 = vst [vmem:[%s529 + $0x40] sm:$0xff] %v1484
      %1503 = vst [vmem:[%s529 + $0x48] sm:$0xff] %v1485
      %1504 = vst [vmem:[%s529 + $0x50] sm:$0xff] %v1486
      %1505 = vst [vmem:[%s529 + $0x58] sm:$0xff] %v1487
      %1506 = vst [vmem:[%s529 + $0x60] sm:$0xff] %v1488
      %1507 = vst [vmem:[%s529 + $0x68] sm:$0xff] %v1489
      %1508 = vst [vmem:[%s529 + $0x70] sm:$0xff] %v1490
      %1509 = vst [vmem:[%s529 + $0x78] sm:$0xff] %v1491
      %1510 = vst [vmem:[%s529 + $0x80] sm:$0xff] %v1492
      %1511 = vst [vmem:[%s529 + $0x88] sm:$0xff] %v1493
      %v1512 = vpack.c.bf16 %v1478, %v1476
      %v1513 = vpack.c.bf16 %v1479, %v1477
      %v1514 = vpack.c.bf16 %v1482, %v1480
      %v1515 = vpack.c.bf16 %v1483, %v1481
      %v1516 = vpack.c.bf16 %v1486, %v1484
      %v1517 = vpack.c.bf16 %v1487, %v1485
      %v1518 = vpack.c.bf16 %v1490, %v1488
      %v1519 = vpack.c.bf16 %v1491, %v1489
      %v1520 = vpack.c.bf16 %v1492, %v1492
      %v1521 = vpack.c.bf16 %v1493, %v1493
      %v1522 = vld [vmem:[%s10] sm:$0xf]
      %v1523 = vld [vmem:[%s10 + $0x4] sm:$0xf]
      %v1524 = vld [vmem:[%s10 + $0x8] sm:$0xf]
      %v1525 = vld [vmem:[%s10 + $0xc] sm:$0xf]
      %v1526 = vld [vmem:[%s10 + $0x10] sm:$0xf]
      %v1527 = vld [vmem:[%s10 + $0x14] sm:$0xf]
      %v1528 = vld [vmem:[%s10 + $0x18] sm:$0xf]
      %v1529 = vld [vmem:[%s10 + $0x1c] sm:$0xf]
      %v1530 = vld [vmem:[%s10 + $0x20] sm:$0xf]
      %v1531 = vld [vmem:[%s10 + $0x24] sm:$0xf]
      %v1532 = vld [vmem:[%s10 + $0x28] sm:$0xf]
      %v1533 = vld [vmem:[%s10 + $0x2c] sm:$0xf]
      %v1534 = vld [vmem:[%s10 + $0x30] sm:$0xf]
      %v1535 = vld [vmem:[%s10 + $0x34] sm:$0xf]
      %v1536 = vld [vmem:[%s10 + $0x38] sm:$0xf]
      %v1537 = vld [vmem:[%s10 + $0x3c] sm:$0xf]
      %v1538 = vld [vmem:[%s10 + $0x40] sm:$0xf]
      %v1539 = vld [vmem:[%s10 + $0x44] sm:$0xf]
      %v1540 = vld [vmem:[%s10 + $0x48] sm:$0xf]
      %v1541 = vld [vmem:[%s10 + $0x4c] sm:$0xf]
      %v1542 = vld [vmem:[%s10 + $0x50] sm:$0xf]
      %v1543 = vld [vmem:[%s10 + $0x54] sm:$0xf]
      %v1544 = vld [vmem:[%s10 + $0x58] sm:$0xf]
      %v1545 = vld [vmem:[%s10 + $0x5c] sm:$0xf]
      %v1546 = vld [vmem:[%s10 + $0x60] sm:$0xf]
      %v1547 = vld [vmem:[%s10 + $0x64] sm:$0xf]
      %v1548 = vld [vmem:[%s10 + $0x68] sm:$0xf]
      %v1549 = vld [vmem:[%s10 + $0x6c] sm:$0xf]
      %v1550 = vld [vmem:[%s10 + $0x70] sm:$0xf]
      %v1551 = vld [vmem:[%s10 + $0x74] sm:$0xf]
      %v1552 = vld [vmem:[%s10 + $0x78] sm:$0xf]
      %v1553 = vld [vmem:[%s10 + $0x7c] sm:$0xf]
      %v1586 = vunpack.c.l.b16 %v1522
      %v1587 = vunpack.c.l.b16 %v1523
      %v1588 = vunpack.c.l.b16 %v1524
      %v1589 = vunpack.c.l.b16 %v1525
      %v1590 = vunpack.c.l.b16 %v1526
      %v1591 = vunpack.c.l.b16 %v1527
      %v1592 = vunpack.c.l.b16 %v1528
      %v1593 = vunpack.c.l.b16 %v1529
      %v1594 = vunpack.c.l.b16 %v1530
      %v1595 = vunpack.c.l.b16 %v1531
      %v1596 = vunpack.c.l.b16 %v1532
      %v1597 = vunpack.c.l.b16 %v1533
      %v1598 = vunpack.c.l.b16 %v1534
      %v1599 = vunpack.c.l.b16 %v1535
      %v1600 = vunpack.c.l.b16 %v1536
      %v1601 = vunpack.c.l.b16 %v1537
      %v1602 = vunpack.c.l.b16 %v1538
      %v1603 = vunpack.c.l.b16 %v1539
      %v1604 = vunpack.c.l.b16 %v1540
      %v1605 = vunpack.c.l.b16 %v1541
      %v1606 = vunpack.c.l.b16 %v1542
      %v1607 = vunpack.c.l.b16 %v1543
      %v1608 = vunpack.c.l.b16 %v1544
      %v1609 = vunpack.c.l.b16 %v1545
      %v1610 = vunpack.c.l.b16 %v1546
      %v1611 = vunpack.c.l.b16 %v1547
      %v1612 = vunpack.c.l.b16 %v1548
      %v1613 = vunpack.c.l.b16 %v1549
      %v1614 = vunpack.c.l.b16 %v1550
      %v1615 = vunpack.c.l.b16 %v1551
      %v1616 = vunpack.c.l.b16 %v1552
      %v1617 = vunpack.c.l.b16 %v1553
      %v1618 = vpack.c.b16 %v1587, %v1586
      %v1619 = vpack.c.b16 %v1589, %v1588
      %v1620 = vpack.c.b16 %v1591, %v1590
      %v1621 = vpack.c.b16 %v1593, %v1592
      %v1622 = vpack.c.b16 %v1595, %v1594
      %v1623 = vpack.c.b16 %v1597, %v1596
      %v1624 = vpack.c.b16 %v1599, %v1598
      %v1625 = vpack.c.b16 %v1601, %v1600
      %v1626 = vpack.c.b16 %v1603, %v1602
      %v1627 = vpack.c.b16 %v1605, %v1604
      %v1628 = vpack.c.b16 %v1607, %v1606
      %v1629 = vpack.c.b16 %v1609, %v1608
      %v1630 = vpack.c.b16 %v1611, %v1610
      %v1631 = vpack.c.b16 %v1613, %v1612
      %v1632 = vpack.c.b16 %v1615, %v1614
      %v1633 = vpack.c.b16 %v1617, %v1616
      %1650 = vmatprep.subr.bf16.mxu0 0
      %1651 = vmatpush1.bf16.msra.mxu0 %v1625
      %1652 = vmatprep.subr.bf16.mxu0 0
      %1653 = vmatpush1.bf16.msra.mxu0 %v1624
      %1654 = vmatprep.subr.bf16.mxu0 0
      %1655 = vmatpush1.bf16.msra.mxu0 %v1623
      %1656 = vmatprep.subr.bf16.mxu0 0
      %1657 = vmatpush1.bf16.msra.mxu0 %v1622
      %1658 = vmatprep.subr.bf16.mxu0 0
      %1659 = vmatpush1.bf16.msra.mxu0 %v1621
      %1660 = vmatprep.subr.bf16.mxu0 0
      %1661 = vmatpush1.bf16.msra.mxu0 %v1620
      %1662 = vmatprep.subr.bf16.mxu0 0
      %1663 = vmatpush1.bf16.msra.mxu0 %v1619
      %1664 = vmatprep.subr.bf16.mxu0 0
      %1665 = vmatpush1.bf16.msra.mxu0 %v1618
      %1666 = vmatprep.subr.bf16.mxu0 0
      %1667 = vmatpush2.bf16.msra.mxu0 %v1633
      %1668 = vmatprep.subr.bf16.mxu0 0
      %1669 = vmatpush2.bf16.msra.mxu0 %v1632
      %1670 = vmatprep.subr.bf16.mxu0 0
      %1671 = vmatpush2.bf16.msra.mxu0 %v1631
      %1672 = vmatprep.subr.bf16.mxu0 0
      %1673 = vmatpush2.bf16.msra.mxu0 %v1630
      %1674 = vmatprep.subr.bf16.mxu0 0
      %1675 = vmatpush2.bf16.msra.mxu0 %v1629
      %1676 = vmatprep.subr.bf16.mxu0 0
      %1677 = vmatpush2.bf16.msra.mxu0 %v1628
      %1678 = vmatprep.subr.bf16.mxu0 0
      %1679 = vmatpush2.bf16.msra.mxu0 %v1627
      %1680 = vmatprep.subr.bf16.mxu0 0
      %1681 = vmatpush2.bf16.msra.mxu0 %v1626
      %1682 = vmatprep.mubr.bf16.mxu0 %v1513
      %1683 = vmatmul.mubr.bf16.gmra.mxu0 %v1512
      %v1684 = vpop.f32.mrf.mxu0
      %v1685 = vadd.f32 0.0, %v1684
      %v1686 = vpop.f32.mrf.mxu0
      %v1687 = vpop.f32.mrf.mxu0
      %v1688 = vadd.f32 0.0, %v1687
      %v1689 = vpop.f32.mrf.mxu0
      %1690 = vmatprep.mubr.bf16.mxu0 %v1515
      %1691 = vmatmul.mubr.bf16.gmra.mxu0 %v1514
      %v1692 = vpop.f32.mrf.mxu0
      %v1693 = vadd.f32 0.0, %v1692
      %v1694 = vpop.f32.mrf.mxu0
      %v1695 = vpop.f32.mrf.mxu0
      %v1696 = vadd.f32 0.0, %v1695
      %v1697 = vpop.f32.mrf.mxu0
      %1698 = vmatprep.mubr.bf16.mxu0 %v1517
      %1699 = vmatmul.mubr.bf16.gmra.mxu0 %v1516
      %v1700 = vpop.f32.mrf.mxu0
      %v1701 = vadd.f32 0.0, %v1700
      %v1702 = vpop.f32.mrf.mxu0
      %v1703 = vpop.f32.mrf.mxu0
      %v1704 = vadd.f32 0.0, %v1703
      %v1705 = vpop.f32.mrf.mxu0
      %1706 = vmatprep.mubr.bf16.mxu0 %v1519
      %1707 = vmatmul.mubr.bf16.gmra.mxu0 %v1518
      %v1708 = vpop.f32.mrf.mxu0
      %v1709 = vadd.f32 0.0, %v1708
      %v1710 = vpop.f32.mrf.mxu0
      %v1711 = vpop.f32.mrf.mxu0
      %v1712 = vadd.f32 0.0, %v1711
      %v1713 = vpop.f32.mrf.mxu0
      %1714 = vmatprep.mubr.bf16.mxu0 %v1521
      %1715 = vmatmul.mubr.bf16.gmra.mxu0 %v1520
      %v1716 = vpop.f32.mrf.mxu0
      %v1717 = vadd.f32 0.0, %v1716
      %v1718 = vpop.f32.mrf.mxu0
      %v1719 = vpop.f32.mrf.mxu0
      %v1720 = vpop.f32.mrf.mxu0
      %1721 = vdwg.mxu0
      %v1722 = vadd.f32 %v1685, %v1688
      %v1723 = vadd.f32 %v1722, %v1693
      %v1724 = vadd.f32 %v1723, %v1696
      %v1725 = vadd.f32 %v1724, %v1701
      %v1726 = vadd.f32 %v1725, %v1704
      %v1727 = vadd.f32 %v1726, %v1709
      %v1728 = vadd.f32 %v1727, %v1712
      %v1729 = vadd.f32 %v1728, %v1717
      %v1730 = vrot.slane %v1729, 4
      %v1731 = vadd.f32 %v1729, %v1730
      %v1732 = vrot.slane %v1731, 2
      %v1733 = vadd.f32 %v1731, %v1732
      %v1734 = vrot.slane %v1733, 1
      %v1735 = vadd.f32 %v1733, %v1734
      %v1736 = vmul.f32 %v1735, %v806
      %v1737 = vsub.f32 %v1685, %v1736
      %v1738 = vsub.f32 %v1688, %v1736
      %v1739 = vsub.f32 %v1693, %v1736
      %v1740 = vsub.f32 %v1696, %v1736
      %v1741 = vsub.f32 %v1701, %v1736
      %v1742 = vsub.f32 %v1704, %v1736
      %v1743 = vsub.f32 %v1709, %v1736
      %v1744 = vsub.f32 %v1712, %v1736
      %v1745 = vsub.f32 %v1717, %v1736
      %v1746 = vmul.f32 %v1737, %v1737
      %v1747 = vmul.f32 %v1738, %v1738
      %v1748 = vmul.f32 %v1739, %v1739
      %v1749 = vmul.f32 %v1740, %v1740
      %v1750 = vmul.f32 %v1741, %v1741
      %v1751 = vmul.f32 %v1742, %v1742
      %v1752 = vmul.f32 %v1743, %v1743
      %v1753 = vmul.f32 %v1744, %v1744
      %v1754 = vmul.f32 %v1745, %v1745
      %v1755 = vadd.f32 %v1746, %v1747
      %v1756 = vadd.f32 %v1755, %v1748
      %v1757 = vadd.f32 %v1756, %v1749
      %v1758 = vadd.f32 %v1757, %v1750
      %v1759 = vadd.f32 %v1758, %v1751
      %v1760 = vadd.f32 %v1759, %v1752
      %v1761 = vadd.f32 %v1760, %v1753
      %v1762 = vadd.f32 %v1761, %v1754
      %v1763 = vrot.slane %v1762, 4
      %v1764 = vadd.f32 %v1762, %v1763
      %v1765 = vrot.slane %v1764, 2
      %v1766 = vadd.f32 %v1764, %v1765
      %v1767 = vrot.slane %v1766, 1
      %v1768 = vadd.f32 %v1766, %v1767
      %v1769 = vmul.f32 %v1768, %v806
      %v1770 = vadd.f32 %v1769, 1e-05
      %v1771 = vrsqrt.pop %v1770
      %v1772 = vmul.f32 %v1737, %v1771
      %v1773 = vmul.f32 %v1738, %v1771
      %v1774 = vmul.f32 %v1739, %v1771
      %v1775 = vmul.f32 %v1740, %v1771
      %v1776 = vmul.f32 %v1741, %v1771
      %v1777 = vmul.f32 %v1742, %v1771
      %v1778 = vmul.f32 %v1743, %v1771
      %v1779 = vmul.f32 %v1744, %v1771
      %v1780 = vmul.f32 %v1745, %v1771
      %v1781 = vld [vmem:[%s11] sm:$0x1]
      %v1783 = vlaneseq
      %v1784 = vshrl.u32 %v1783, 7
      %v1785 = vsub.s32 0, %v1784
      %v1786 = vrot.slane %v1781, %v1785
      %v1788 = vmul.f32 %v1772, %v1786
      %v1789 = vmul.f32 %v1773, %v1786
      %v1790 = vmul.f32 %v1774, %v1786
      %v1791 = vmul.f32 %v1775, %v1786
      %v1792 = vmul.f32 %v1776, %v1786
      %v1793 = vmul.f32 %v1777, %v1786
      %v1794 = vmul.f32 %v1778, %v1786
      %v1795 = vmul.f32 %v1779, %v1786
      %v1796 = vmul.f32 %v1780, %v1786
      %v1797 = vld [vmem:[%s12] sm:$0x1]
      %v1799 = vlaneseq
      %v1800 = vshrl.u32 %v1799, 7
      %v1801 = vsub.s32 0, %v1800
      %v1802 = vrot.slane %v1797, %v1801
      %v1804 = vadd.f32 %v1788, %v1802
      %v1805 = vadd.f32 %v1789, %v1802
      %v1806 = vadd.f32 %v1790, %v1802
      %v1807 = vadd.f32 %v1791, %v1802
      %v1808 = vadd.f32 %v1792, %v1802
      %v1809 = vadd.f32 %v1793, %v1802
      %v1810 = vadd.f32 %v1794, %v1802
      %v1811 = vadd.f32 %v1795, %v1802
      %v1812 = vadd.f32 %v1796, %v1802
      %v1813 = vmax.f32 %v1804, 0.0
      %v1814 = vmax.f32 %v1805, 0.0
      %v1815 = vmax.f32 %v1806, 0.0
      %v1816 = vmax.f32 %v1807, 0.0
      %v1817 = vmax.f32 %v1808, 0.0
      %v1818 = vmax.f32 %v1809, 0.0
      %v1819 = vmax.f32 %v1810, 0.0
      %v1820 = vmax.f32 %v1811, 0.0
      %v1821 = vmax.f32 %v1812, 0.0
      %v1822 = vpack.c.bf16 %v1814, %v1813
      %v1823 = vpack.c.bf16 %v1816, %v1815
      %v1824 = vpack.c.bf16 %v1818, %v1817
      %v1825 = vpack.c.bf16 %v1820, %v1819
      %v1826 = vpack.c.bf16 %v1821, %v1821
      %v1827 = vld [vmem:[%s13] sm:$0xff]
      %v1828 = vld [vmem:[%s13 + $0x8] sm:$0xff]
      %v1829 = vld [vmem:[%s13 + $0x10] sm:$0xff]
      %v1830 = vld [vmem:[%s13 + $0x18] sm:$0xff]
      %v1831 = vld [vmem:[%s13 + $0x20] sm:$0xff]
      %v1832 = vld [vmem:[%s13 + $0x28] sm:$0xff]
      %v1833 = vld [vmem:[%s13 + $0x30] sm:$0xff]
      %v1834 = vld [vmem:[%s13 + $0x38] sm:$0xff]
      %v1835 = vld [vmem:[%s13 + $0x40] sm:$0xff]
      %v1836 = vld [vmem:[%s13 + $0x48] sm:$0xff]
      %v1837 = vld [vmem:[%s13 + $0x50] sm:$0xff]
      %v1838 = vld [vmem:[%s13 + $0x58] sm:$0xff]
      %v1839 = vld [vmem:[%s13 + $0x60] sm:$0xff]
      %v1840 = vld [vmem:[%s13 + $0x68] sm:$0xff]
      %v1841 = vld [vmem:[%s13 + $0x70] sm:$0xff]
      %v1842 = vld [vmem:[%s13 + $0x78] sm:$0xff]
      %v1843 = vld [vmem:[%s14] sm:$0x3]
      %v1845 = vlaneseq
      %v1846 = vshrl.u32 %v1845, 7
      %v1847 = vsub.s32 0, %v1846
      %v1848 = vrot.slane %v1843, %v1847
      %v1849 = vlaneseq
      %v1850 = vshrl.u32 %v1849, 7
      %v1851 = vsub.s32 1, %v1850
      %v1852 = vrot.slane %v1843, %v1851
      %v1871 = vunpack.c.l.b16 %v1827
      %v1872 = vunpack.c.h.b16 %v1827
      %v1873 = vunpack.c.l.b16 %v1828
      %v1874 = vunpack.c.h.b16 %v1828
      %v1875 = vunpack.c.l.b16 %v1829
      %v1876 = vunpack.c.h.b16 %v1829
      %v1877 = vunpack.c.l.b16 %v1830
      %v1878 = vunpack.c.h.b16 %v1830
      %v1879 = vunpack.c.l.b16 %v1831
      %v1880 = vunpack.c.h.b16 %v1831
      %v1881 = vunpack.c.l.b16 %v1832
      %v1882 = vunpack.c.h.b16 %v1832
      %v1883 = vunpack.c.l.b16 %v1833
      %v1884 = vunpack.c.h.b16 %v1833
      %v1885 = vunpack.c.l.b16 %v1834
      %v1886 = vunpack.c.h.b16 %v1834
      %v1887 = vunpack.c.l.b16 %v1835
      %v1888 = vunpack.c.h.b16 %v1835
      %v1889 = vunpack.c.l.b16 %v1836
      %v1890 = vunpack.c.h.b16 %v1836
      %v1891 = vunpack.c.l.b16 %v1837
      %v1892 = vunpack.c.h.b16 %v1837
      %v1893 = vunpack.c.l.b16 %v1838
      %v1894 = vunpack.c.h.b16 %v1838
      %v1895 = vunpack.c.l.b16 %v1839
      %v1896 = vunpack.c.h.b16 %v1839
      %v1897 = vunpack.c.l.b16 %v1840
      %v1898 = vunpack.c.h.b16 %v1840
      %v1899 = vunpack.c.l.b16 %v1841
      %v1900 = vunpack.c.h.b16 %v1841
      %v1901 = vunpack.c.l.b16 %v1842
      %v1902 = vunpack.c.h.b16 %v1842
      %v1903 = vpack.c.b16 %v1873, %v1871
      %v1904 = vpack.c.b16 %v1874, %v1872
      %v1905 = vpack.c.b16 %v1877, %v1875
      %v1906 = vpack.c.b16 %v1878, %v1876
      %v1907 = vpack.c.b16 %v1881, %v1879
      %v1908 = vpack.c.b16 %v1882, %v1880
      %v1909 = vpack.c.b16 %v1885, %v1883
      %v1910 = vpack.c.b16 %v1886, %v1884
      %v1911 = vpack.c.b16 %v1889, %v1887
      %v1912 = vpack.c.b16 %v1890, %v1888
      %v1913 = vpack.c.b16 %v1893, %v1891
      %v1914 = vpack.c.b16 %v1894, %v1892
      %v1915 = vpack.c.b16 %v1897, %v1895
      %v1916 = vpack.c.b16 %v1898, %v1896
      %v1917 = vpack.c.b16 %v1901, %v1899
      %v1918 = vpack.c.b16 %v1902, %v1900
      %1935 = vmatprep.subr.bf16.mxu0 %v1918
      %1936 = vmatpush1.bf16.msra.mxu0 %v1917
      %1937 = vmatprep.subr.bf16.mxu0 %v1916
      %1938 = vmatpush1.bf16.msra.mxu0 %v1915
      %1939 = vmatprep.subr.bf16.mxu0 %v1914
      %1940 = vmatpush1.bf16.msra.mxu0 %v1913
      %1941 = vmatprep.subr.bf16.mxu0 %v1912
      %1942 = vmatpush1.bf16.msra.mxu0 %v1911
      %1943 = vmatprep.subr.bf16.mxu0 %v1910
      %1944 = vmatpush1.bf16.msra.mxu0 %v1909
      %1945 = vmatprep.subr.bf16.mxu0 %v1908
      %1946 = vmatpush1.bf16.msra.mxu0 %v1907
      %1947 = vmatprep.subr.bf16.mxu0 %v1906
      %1948 = vmatpush1.bf16.msra.mxu0 %v1905
      %1949 = vmatprep.subr.bf16.mxu0 %v1904
      %1950 = vmatpush1.bf16.msra.mxu0 %v1903
      %1951 = vmatprep.subr.bf16.mxu0 0
      %1952 = vmatpush2.bf16.msra.mxu0 0
      %1953 = vmatprep.subr.bf16.mxu0 0
      %1954 = vmatpush2.bf16.msra.mxu0 0
      %1955 = vmatprep.subr.bf16.mxu0 0
      %1956 = vmatpush2.bf16.msra.mxu0 0
      %1957 = vmatprep.subr.bf16.mxu0 0
      %1958 = vmatpush2.bf16.msra.mxu0 0
      %1959 = vmatprep.subr.bf16.mxu0 0
      %1960 = vmatpush2.bf16.msra.mxu0 0
      %1961 = vmatprep.subr.bf16.mxu0 0
      %1962 = vmatpush2.bf16.msra.mxu0 0
      %1963 = vmatprep.subr.bf16.mxu0 0
      %1964 = vmatpush2.bf16.msra.mxu0 0
      %1965 = vmatprep.subr.bf16.mxu0 0
      %1966 = vmatpush2.bf16.msra.mxu0 0
      %1967 = vmatprep.mubr.bf16.mxu0 0
      %1968 = vmatmul.mubr.bf16.gmra.mxu0 %v1822
      %v1969 = vpop.f32.mrf.mxu0
      %v1970 = vadd.f32 %v1848, %v1969
      %v1971 = vpop.f32.mrf.mxu0
      %v1972 = vadd.f32 %v1852, %v1971
      %v1973 = vpop.f32.mrf.mxu0
      %v1974 = vadd.f32 %v1848, %v1973
      %v1975 = vpop.f32.mrf.mxu0
      %v1976 = vadd.f32 %v1852, %v1975
      %1977 = vmatprep.mubr.bf16.mxu0 0
      %1978 = vmatmul.mubr.bf16.gmra.mxu0 %v1823
      %v1979 = vpop.f32.mrf.mxu0
      %v1980 = vadd.f32 %v1848, %v1979
      %v1981 = vpop.f32.mrf.mxu0
      %v1982 = vadd.f32 %v1852, %v1981
      %v1983 = vpop.f32.mrf.mxu0
      %v1984 = vadd.f32 %v1848, %v1983
      %v1985 = vpop.f32.mrf.mxu0
      %v1986 = vadd.f32 %v1852, %v1985
      %1987 = vmatprep.mubr.bf16.mxu0 0
      %1988 = vmatmul.mubr.bf16.gmra.mxu0 %v1824
      %v1989 = vpop.f32.mrf.mxu0
      %v1990 = vadd.f32 %v1848, %v1989
      %v1991 = vpop.f32.mrf.mxu0
      %v1992 = vadd.f32 %v1852, %v1991
      %v1993 = vpop.f32.mrf.mxu0
      %v1994 = vadd.f32 %v1848, %v1993
      %v1995 = vpop.f32.mrf.mxu0
      %v1996 = vadd.f32 %v1852, %v1995
      %1997 = vmatprep.mubr.bf16.mxu0 0
      %1998 = vmatmul.mubr.bf16.gmra.mxu0 %v1825
      %v1999 = vpop.f32.mrf.mxu0
      %v2000 = vadd.f32 %v1848, %v1999
      %v2001 = vpop.f32.mrf.mxu0
      %v2002 = vadd.f32 %v1852, %v2001
      %v2003 = vpop.f32.mrf.mxu0
      %v2004 = vadd.f32 %v1848, %v2003
      %v2005 = vpop.f32.mrf.mxu0
      %v2006 = vadd.f32 %v1852, %v2005
      %2007 = vmatprep.mubr.bf16.mxu0 0
      %2008 = vmatmul.mubr.bf16.gmra.mxu0 %v1826
      %v2009 = vpop.f32.mrf.mxu0
      %v2010 = vadd.f32 %v1848, %v2009
      %v2011 = vpop.f32.mrf.mxu0
      %v2012 = vadd.f32 %v1852, %v2011
      %v2013 = vpop.f32.mrf.mxu0
      %v2014 = vpop.f32.mrf.mxu0
      %2015 = vdwg.mxu0
      %2016 = vst [vmem:[%s534] sm:$0xff] %v1970
      %2017 = vst [vmem:[%s534 + $0x8] sm:$0xff] %v1972
      %2018 = vst [vmem:[%s534 + $0x10] sm:$0xff] %v1974
      %2019 = vst [vmem:[%s534 + $0x18] sm:$0xff] %v1976
      %2020 = vst [vmem:[%s534 + $0x20] sm:$0xff] %v1980
      %2021 = vst [vmem:[%s534 + $0x28] sm:$0xff] %v1982
      %2022 = vst [vmem:[%s534 + $0x30] sm:$0xff] %v1984
      %2023 = vst [vmem:[%s534 + $0x38] sm:$0xff] %v1986
      %2024 = vst [vmem:[%s534 + $0x40] sm:$0xff] %v1990
      %2025 = vst [vmem:[%s534 + $0x48] sm:$0xff] %v1992
      %2026 = vst [vmem:[%s534 + $0x50] sm:$0xff] %v1994
      %2027 = vst [vmem:[%s534 + $0x58] sm:$0xff] %v1996
      %2028 = vst [vmem:[%s534 + $0x60] sm:$0xff] %v2000
      %2029 = vst [vmem:[%s534 + $0x68] sm:$0xff] %v2002
      %2030 = vst [vmem:[%s534 + $0x70] sm:$0xff] %v2004
      %2031 = vst [vmem:[%s534 + $0x78] sm:$0xff] %v2006
      %2032 = vst [vmem:[%s534 + $0x80] sm:$0xff] %v2010
      %2033 = vst [vmem:[%s534 + $0x88] sm:$0xff] %v2012
      %p2034 = scmp.lt.s32.totalorder %s28, 1
      %s2035 = scalar_select %p2034, %s28, 1
      %s2036 = smul.addr %s2035, 18
      %s2037 = smul.addr %s2036, 8
      %s2038 = scalar_lea.vmem %s15, %s2037
      %p2039 = scmp.lt.s32.totalorder %s28, 1
      %s2040 = scalar_select %p2039, %s28, 1
      %s2041 = smul.addr %s2040, 18
      %s2042 = smul.addr %s2041, 8
      %s2043 = scalar_lea.vmem %s16, %s2042
      // Predicated region
      $region81: #{_lambda_.1} parent=79 // pred_check
        %p2044 = pneg %p366
      $region82: #{_lambda_.1} parent=79 // pred_check_branch
        %2046 = sbr.rel (%p2044) target = $region84
      $region83: #{_lambda_.1} parent=79 // pred_region
        _
      $region84: #{_lambda_.1} parent=79 // pred_fallthru
        _
      // Predicated region
      $region85: #{_lambda_.1} parent=79 // pred_check
        %p2047 = pneg %p392
      $region86: #{_lambda_.1} parent=79 // pred_check_branch
        %2049 = sbr.rel (%p2047) target = $region88
      $region87: #{_lambda_.1} parent=79 // pred_region
        _
      $region88: #{_lambda_.1} parent=79 // pred_fallthru
        _
    $region80: #{_lambda_.1} parent=5 // pred_fallthru
      _
    %p2050 = scmp.le.s32.totalorder 2, %s23
    // Predicated region
    $region89: #{_lambda_.1} parent=5 // pred_check
      %p2051 = pneg %p2050
    $region90: #{_lambda_.1} parent=5 // pred_check_branch
      %2053 = sbr.rel (%p2051) target = $region92
    $region91: #{_lambda_.1} parent=5 // pred_region
      %s2054 = ssub.s32 %s23, 2
      // Predicated region
      $region93: #{_lambda_.1} parent=91 // pred_check
        %p2055 = pneg %p372
      $region94: #{_lambda_.1} parent=91 // pred_check_branch
        %2057 = sbr.rel (%p2055) target = $region96
      $region95: #{_lambda_.1} parent=91 // pred_region
        %p2058 = scmp.lt.s32.totalorder %s29, 1
        %s2059 = scalar_select %p2058, %s29, 1
        %s2060 = smul.addr %s2059, 18
        %s2061 = smul.addr %s2060, 8
        %s2062 = scalar_lea.vmem %s15, %s2061
      $region96: #{_lambda_.1} parent=91 // pred_fallthru
        _
      // Predicated region
      $region97: #{_lambda_.1} parent=91 // pred_check
        %p2063 = pneg %p398
      $region98: #{_lambda_.1} parent=91 // pred_check_branch
        %2065 = sbr.rel (%p2063) target = $region100
      $region99: #{_lambda_.1} parent=91 // pred_region
        %p2066 = scmp.lt.s32.totalorder %s29, 1
        %s2067 = scalar_select %p2066, %s29, 1
        %s2068 = smul.addr %s2067, 18
        %s2069 = smul.addr %s2068, 8
        %s2070 = scalar_lea.vmem %s16, %s2069
      $region100: #{_lambda_.1} parent=91 // pred_fallthru
        _
    $region92: #{_lambda_.1} parent=5 // pred_fallthru
      _
  $region6: #{_lambda_.1} parent=0 // loop_footer
    %s27 = sadd.s32 1, %s23
  $region7: #{_lambda_.1} parent=0 // loop_footer_branch
    %22 = sbr.rel target = $region3
  $region8: #{_lambda_.1} parent=0 // loop_exit
    _

</llo_original>
